<compile_context>
chip_gen: v5e
topology: v5e:2x2
jax: 0.10.0
libtpu: 0.0.40
codegen_flags: <defaults>
</compile_context>

<pallas_src>
import functools

import jax
import jax.numpy as jnp
from jax.experimental import pallas as pl
from jax.experimental.pallas import tpu as pltpu


def _permuter_kernel(zt_ref, out_ref, *, tb, n, inv_tau2, matmul_dtype):
    """One grid step: (TB, N, N) soft permutations, stored lane-dense as (TB*N, N)."""
    zt = zt_ref[...]                                      # (TB, N) f32

    # |z_i - z_j| per batch row, flattened over (b, i) onto sublanes.
    diff = zt[:, :, None] - zt[:, None, :]                # (TB, N, N)
    abs_diff = jnp.abs(diff).reshape(tb * n, n).astype(matmul_dtype)

    # Upper-triangular ones (k <= j), pre-scaled by 1/tau_2, generated
    # in-register (cheap: ~N*N/1024 vregs of VPU work, hidden under the MXU).
    row = jax.lax.broadcasted_iota(jnp.int32, (n, n), 0)
    col = jax.lax.broadcasted_iota(jnp.int32, (n, n), 1)
    tri = jnp.where(row <= col, jnp.float32(inv_tau2),
                    jnp.float32(0.0)).astype(matmul_dtype)

    # Inclusive cumsum over j (already divided by tau_2) as one big MXU matmul
    # with f32 accumulation.
    csum = jnp.dot(abs_diff, tri,
                   preferred_element_type=jnp.float32)    # (TB*N, N)

    # Softmax shift-invariance: the per-row z_tilde/tau_2 term cancels, and
    # csum is monotone non-decreasing along lanes (non-negative summands), so
    # the stable shift is csum[:, 0] -- no lane-max tree, no zcol relayout.
    e = jnp.exp(csum[:, 0:1] - csum)                      # (TB*N, N)

    # Row sum (lane reduce).  If profiling ever shows the 2 XLU units binding
    # here, this can move to the slack MXU as jnp.dot(e, ones((N, 1))).
    denom = jnp.sum(e, axis=-1, keepdims=True)
    p = e * pl.reciprocal(denom, approx=True)             # EUP slot

    out_ref[...] = p.astype(out_ref.dtype)                # unmasked lane-dense vst


def _pick_tb(b_pad: int) -> int:
    # Prefer bigger tiles (amortize ~0.35us/step), but keep >= 2 grid steps
    # when possible so v7x's 2 TensorCores both get work.
    for cand in (64, 32, 16, 8):
        if b_pad % cand == 0 and b_pad // cand >= 2:
            return cand
    for cand in (64, 32, 16, 8):
        if b_pad % cand == 0:
            return cand
    return b_pad  # unreachable after padding to a multiple of 8


def neural_sort_permuter_pallas(z_tilde: jax.Array,
                                tau_2: float = 4.0,
                                tb: int | None = None,
                                matmul_dtype=jnp.float32,
                                out_dtype=None) -> jax.Array:
    """z_tilde: [B, N] float32 -> P: [B, N, N] soft permutation matrices."""
    B, N = z_tilde.shape
    out_dtype = z_tilde.dtype if out_dtype is None else out_dtype
    inv_tau2 = float(1.0 / tau_2)

    # Pad the batch up to a sublane multiple so tiles stay bounded (never put
    # a whole odd batch in one VMEM block); padded rows are sliced off below.
    b_pad = ((B + 7) // 8) * 8
    if b_pad != B:
        z_tilde = jnp.pad(z_tilde, ((0, b_pad - B), (0, 0)))

    if tb is None:
        tb = _pick_tb(b_pad)
    assert b_pad % tb == 0, "batch tile must divide the (padded) batch"
    grid = b_pad // tb

    # Explicit VMEM budget (bytes): double-buffered output + input blocks plus
    # the live f32 intermediates; clamped so it is safe on v5e (16 MiB scoped
    # default -> raise) and on v7x (64 MiB physical -> never over-ask).
    blk = tb * N * N
    budget = (2 * blk * jnp.dtype(out_dtype).itemsize          # output dbl-buf
              + 2 * tb * N * 4                                  # input dbl-buf
              + blk * jnp.dtype(matmul_dtype).itemsize          # abs_diff
              + 4 * blk * 4                                     # diff/csum/e/p
              + (2 << 20))                                      # slack
    vmem_limit = int(min(max(budget, 24 << 20), 48 << 20))

    kernel = functools.partial(_permuter_kernel, tb=tb, n=N,
                               inv_tau2=inv_tau2, matmul_dtype=matmul_dtype)

    out_flat = pl.pallas_call(
        kernel,
        out_shape=jax.ShapeDtypeStruct((b_pad * N, N), out_dtype),
        grid_spec=pltpu.PrefetchScalarGridSpec(
            num_scalar_prefetch=0,
            grid=(grid,),
            in_specs=[
                # TB rows of z_tilde per step
                pl.BlockSpec((tb, N), lambda b: (b, 0)),
            ],
            # lane-dense flat output block; reshaped to (B, N, N) outside
            out_specs=pl.BlockSpec((tb * N, N), lambda b: (b, 0)),
        ),
        compiler_params=pltpu.CompilerParams(
            dimension_semantics=("parallel",),
            vmem_limit_bytes=vmem_limit),
    )(z_tilde)

    return out_flat.reshape(b_pad, N, N)[:B]


def sample_z_tilde(z: jax.Array, tau: float, key: jax.Array) -> jax.Array:
    """Gumbel perturbation (glue, mirrors the torch.rand_like-based sampling)."""
    # TODO(synk): optionally fuse the Gumbel sampling in-kernel with
    # pltpu.prng_seed / prng_random_bits (changes the random stream).
    u = jax.random.uniform(key, z.shape, dtype=z.dtype)
    g = -jnp.log(-jnp.log(u + 1e-20) + 1e-20)
    return z + tau * g


def stochastic_neural_sort_permuter(z, tau, key, tau_2: float = 4.0):
    return neural_sort_permuter_pallas(sample_z_tilde(z, tau, key), tau_2)


def _reference(z_tilde: jax.Array, tau_2: float) -> jax.Array:
    """Pure-JAX reference mirroring the PyTorch forward exactly."""
    z1 = z_tilde[:, :, None]                 # [B, N, 1]
    z2 = z_tilde[:, None, :]                 # [B, 1, N]
    abs_diff = jnp.abs(z1 - z2)              # [B, N, N]
    R = jnp.broadcast_to(z1, abs_diff.shape)
    scores = (R - jnp.cumsum(abs_diff, axis=2)) / tau_2
    return jax.nn.softmax(scores, axis=-1)


if __name__ == "__main__":
    key = jax.random.PRNGKey(0)
    k_z, k_g = jax.random.split(key)

    B, N = 2, 128          # batch of score vectors, N patches (lane-aligned)
    tau = 1.0
    tau_2 = 4.0

    z = jax.random.normal(k_z, (B, N), dtype=jnp.float32)
    z_tilde = sample_z_tilde(z, tau, k_g)

    # Default exact (f32-MXU) path.
    P = neural_sort_permuter_pallas(z_tilde, tau_2)
    jax.block_until_ready(P)

    P_ref = _reference(z_tilde, tau_2)
    assert P.shape == (B, N, N)
    # rows of a soft permutation matrix sum to 1 (approx reciprocal -> ~1e-4 rel)
    assert jnp.allclose(jnp.sum(P, axis=-1), 1.0, atol=1e-3)
    assert jnp.allclose(P, P_ref, atol=1e-3, rtol=1e-3)

    # Optional bf16-MXU fast path (perf flag from the review): validate that it
    # compiles/runs and stays a valid row-stochastic matrix; closeness to the
    # f32 reference is intentionally not asserted (looser numerics by design).
    P_bf = neural_sort_permuter_pallas(z_tilde, tau_2, matmul_dtype=jnp.bfloat16)
    jax.block_until_ready(P_bf)
    assert P_bf.shape == (B, N, N)
    assert jnp.allclose(jnp.sum(P_bf, axis=-1), 1.0, atol=2e-3)

    # End-to-end stochastic forward (sampling + kernel), as in the module.
    P_sto = stochastic_neural_sort_permuter(z, tau, k_g, tau_2)
    jax.block_until_ready(P_sto)
    assert P_sto.shape == (B, N, N)

    print("KERNEL_OK")
</pallas_src>

<mosaic_0001>
module attributes {stable_mosaic.version = 11 : i64} {
  func.func @_permuter_kernel(%arg0: i32, %arg1: memref<8x128xf32, #tpu.memory_space<vmem>>, %arg2: memref<1024x128xf32, #tpu.memory_space<vmem>>) attributes {dimension_semantics = [#tpu.dimension_semantics<parallel>], iteration_bounds = array<i64: 1>, scalar_prefetch = 0 : i64, scratch_operands = 0 : i64, tpu.core_type = #tpu.core_type<tc>, window_params = [{transform_indices = @transform_0, window_bounds = array<i64: 8, 128>}, {transform_indices = @transform_1, window_bounds = array<i64: 1024, 128>}]} {
    %c0 = arith.constant 0 : index
    %c0_0 = arith.constant 0 : index
    %0 = vector.load %arg1[%c0, %c0_0] : memref<8x128xf32, #tpu.memory_space<vmem>>, vector<8x128xf32>
    %1 = vector.shape_cast %0 : vector<8x128xf32> to vector<8x128x1xf32>
    %2 = vector.shape_cast %0 : vector<8x128xf32> to vector<8x1x128xf32>
    %3 = vector.broadcast %1 : vector<8x128x1xf32> to vector<8x128x128xf32>
    %4 = vector.broadcast %2 : vector<8x1x128xf32> to vector<8x128x128xf32>
    %5 = arith.subf %3, %4 : vector<8x128x128xf32>
    %6 = math.absf %5 : vector<8x128x128xf32>
    %7 = vector.shape_cast %6 : vector<8x128x128xf32> to vector<1024x128xf32>
    %8 = tpu.iota {dimensions = array<i32: 0>} : vector<128x128xi32>
    %9 = tpu.iota {dimensions = array<i32: 1>} : vector<128x128xi32>
    %10 = arith.cmpi sle, %8, %9 : vector<128x128xi32>
    %cst = arith.constant 2.500000e-01 : f32
    %cst_1 = arith.constant 0.000000e+00 : f32
    %11 = vector.broadcast %cst : f32 to vector<128x128xf32>
    %12 = vector.broadcast %cst_1 : f32 to vector<128x128xf32>
    %13 = arith.select %10, %11, %12 : vector<128x128xi1>, vector<128x128xf32>
    %cst_2 = arith.constant dense<0.000000e+00> : vector<1024x128xf32>
    %14 = tpu.matmul %7, %13, %cst_2 {dimension_numbers = #tpu.dot_dimension_numbers<[1], [0], [0], [1], [0, 0, 1, 1], [], []>} : vector<1024x128xf32>, vector<128x128xf32>, vector<1024x128xf32> -> vector<1024x128xf32>
    %15 = vector.extract_strided_slice %14 {offsets = [0, 0], sizes = [1024, 1], strides = [1, 1]} : vector<1024x128xf32> to vector<1024x1xf32>
    %16 = vector.broadcast %15 : vector<1024x1xf32> to vector<1024x128xf32>
    %17 = arith.subf %16, %14 : vector<1024x128xf32>
    %18 = math.exp %17 : vector<1024x128xf32>
    %cst_3 = arith.constant dense<0.000000e+00> : vector<1024xf32>
    %19 = vector.multi_reduction <add>, %18, %cst_3 [1] : vector<1024x128xf32> to vector<1024xf32>
    %20 = vector.shape_cast %19 : vector<1024xf32> to vector<1024x1xf32>
    %21 = tpu.reciprocal %20 {approx = true} : vector<1024x1xf32> -> vector<1024x1xf32>
    %22 = vector.broadcast %21 : vector<1024x1xf32> to vector<1024x128xf32>
    %23 = arith.mulf %18, %22 : vector<1024x128xf32>
    %c0_4 = arith.constant 0 : index
    %c0_5 = arith.constant 0 : index
    %24 = vector.load %arg2[%c0_4, %c0_5] : memref<1024x128xf32, #tpu.memory_space<vmem>>, vector<1024x128xf32>
    tpu.vector_store %arg2[%c0_4, %c0_5], %23 {strides = array<i32>} : memref<1024x128xf32, #tpu.memory_space<vmem>>, vector<1024x128xf32>,
    return
  }
  func.func @transform_0(%arg0: i32) -> (i32, i32) {
    %c0_i32 = arith.constant 0 : i32
    %c0_i32_0 = arith.constant 0 : i32
    return %arg0, %c0_i32 : i32, i32
  }
  func.func @transform_1(%arg0: i32) -> (i32, i32) {
    %c0_i32 = arith.constant 0 : i32
    %c0_i32_0 = arith.constant 0 : i32
    return %arg0, %c0_i32 : i32, i32
  }
}

</mosaic_0001>

<llo_original>
// kernel: tpu_custom_call.1
$region0: #{tpu_custom_call.1}
  #allocation0 [shape = 'u32[]', space=smem, size = 0x4, offset = 0x4, fixed_abs, tag = 'smem constant byte address 0x4 - core index']
  #allocation1 [shape = 'u32[72,128]{1,0:T(1,128)}', space=vmem, size = 0x9000, scoped, tag = 'internal scratch']
  %s0 = inlined_call_operand.hbm [shape: f32[8,128], index: 0, kind: input, shape index: {}]
  %s1 = inlined_call_operand.hbm [shape: f32[1024,128], index: 1, kind: output, shape index: {}]
  %s2 = sld [smem:[#allocation0]]
  $region18: #{tpu_custom_call.1} parent=0
    _
  %s4 = ssub.s32 1, %s2
  %s5 = scalar_select 0, %s4, %s2
  $region1: #{tpu_custom_call.1} parent=0
    #allocation2 [shape = 'u8[4096]{0}', space=vmem, size = 0x1000, scoped, tag = 'input window, operand 0, single buffered']
    #allocation3 [shape = 's32[1]{0}', space=sflag, size = 0x4, scoped, tag = 'scoped memory for tpu_custom_call.1']
    #allocation4 [shape = 's32[1]{0}', space=sflag, size = 0x4, scoped, tag = 'scoped memory for tpu_custom_call.1']
    #allocation5 [shape = 'u8[524288]{0}', space=vmem, size = 0x80000, scoped, tag = 'output window, operand 0, single buffered']
    %6 = vsyncpa [#allocation3], 0
    %7 = vsyncpa [#allocation4], 0
    // Predicated region
    $region2: #{tpu_custom_call.1} parent=1 // pred_check
      _
    $region3: #{tpu_custom_call.1} parent=1 // pred_check_branch
      %9 = sbr.rel (0) target = $region5
    $region4: #{tpu_custom_call.1} parent=1 // pred_region
      %11 = vsyncadd [#allocation3], 0
      %s13 = sshll.u32 %s0, 4
      %s14 = int_to_ptr.hbm [resolvable:$true] %s13
      %s15 = sshll.u32 [#allocation2], 4
      %s16 = int_to_ptr.vmem [resolvable:$true] %s15
      %18 = dma.hbm_to_vmem [thread:$0]  %s14, 128, %s16, [#allocation3]
    $region5: #{tpu_custom_call.1} parent=1 // pred_fallthru
      _
    // Predicated region
    $region6: #{tpu_custom_call.1} parent=1 // pred_check
      _
    $region7: #{tpu_custom_call.1} parent=1 // pred_check_branch
      %20 = sbr.rel (0) target = $region9
    $region8: #{tpu_custom_call.1} parent=1 // pred_region
      %22 = dma.done [#allocation3], 128
    $region9: #{tpu_custom_call.1} parent=1 // pred_fallthru
      _
    %v23 = vld [vmem:[#allocation2] sm:$0xff]
    %v24 = vperm.slane %v23, 0
    %v25 = vlaneseq
    %v26 = vshrl.u32 %v25, 7
    %28 = vset.pattern.permute.xlu0 %v26
    %29 = vperm.xlu0 %28, %v24
    %v30 = vpop.permute.xlu0 %29
    %v31 = vlaneseq
    %v32 = vshrl.u32 %v31, 7
    %v33 = vadd.s32 %v32, 8
    %34 = vset.pattern.permute.xlu0 %v33
    %35 = vperm.xlu0 %34, %v24
    %v36 = vpop.permute.xlu0 %35
    %v37 = vlaneseq
    %v38 = vshrl.u32 %v37, 7
    %v39 = vadd.s32 %v38, 16
    %40 = vset.pattern.permute.xlu0 %v39
    %41 = vperm.xlu0 %40, %v24
    %v42 = vpop.permute.xlu0 %41
    %v43 = vlaneseq
    %v44 = vshrl.u32 %v43, 7
    %v45 = vadd.s32 %v44, 24
    %46 = vset.pattern.permute.xlu0 %v45
    %47 = vperm.xlu0 %46, %v24
    %v48 = vpop.permute.xlu0 %47
    %v49 = vlaneseq
    %v50 = vshrl.u32 %v49, 7
    %v51 = vadd.s32 %v50, 32
    %52 = vset.pattern.permute.xlu0 %v51
    %53 = vperm.xlu0 %52, %v24
    %v54 = vpop.permute.xlu0 %53
    %v55 = vlaneseq
    %v56 = vshrl.u32 %v55, 7
    %v57 = vadd.s32 %v56, 40
    %58 = vset.pattern.permute.xlu0 %v57
    %59 = vperm.xlu0 %58, %v24
    %v60 = vpop.permute.xlu0 %59
    %v61 = vlaneseq
    %v62 = vshrl.u32 %v61, 7
    %v63 = vadd.s32 %v62, 48
    %64 = vset.pattern.permute.xlu0 %v63
    %65 = vperm.xlu0 %64, %v24
    %v66 = vpop.permute.xlu0 %65
    %v67 = vlaneseq
    %v68 = vshrl.u32 %v67, 7
    %v69 = vadd.s32 %v68, 56
    %70 = vset.pattern.permute.xlu0 %v69
    %71 = vperm.xlu0 %70, %v24
    %v72 = vpop.permute.xlu0 %71
    %v73 = vlaneseq
    %v74 = vshrl.u32 %v73, 7
    %v75 = vadd.s32 %v74, 64
    %76 = vset.pattern.permute.xlu0 %v75
    %77 = vperm.xlu0 %76, %v24
    %v78 = vpop.permute.xlu0 %77
    %v79 = vlaneseq
    %v80 = vshrl.u32 %v79, 7
    %v81 = vadd.s32 %v80, 72
    %82 = vset.pattern.permute.xlu0 %v81
    %83 = vperm.xlu0 %82, %v24
    %v84 = vpop.permute.xlu0 %83
    %v85 = vlaneseq
    %v86 = vshrl.u32 %v85, 7
    %v87 = vadd.s32 %v86, 80
    %88 = vset.pattern.permute.xlu0 %v87
    %89 = vperm.xlu0 %88, %v24
    %v90 = vpop.permute.xlu0 %89
    %v91 = vlaneseq
    %v92 = vshrl.u32 %v91, 7
    %v93 = vadd.s32 %v92, 88
    %94 = vset.pattern.permute.xlu0 %v93
    %95 = vperm.xlu0 %94, %v24
    %v96 = vpop.permute.xlu0 %95
    %v97 = vlaneseq
    %v98 = vshrl.u32 %v97, 7
    %v99 = vadd.s32 %v98, 96
    %100 = vset.pattern.permute.xlu0 %v99
    %101 = vperm.xlu0 %100, %v24
    %v102 = vpop.permute.xlu0 %101
    %v103 = vlaneseq
    %v104 = vshrl.u32 %v103, 7
    %v105 = vadd.s32 %v104, 104
    %106 = vset.pattern.permute.xlu0 %v105
    %107 = vperm.xlu0 %106, %v24
    %v108 = vpop.permute.xlu0 %107
    %v109 = vlaneseq
    %v110 = vshrl.u32 %v109, 7
    %v111 = vadd.s32 %v110, 112
    %112 = vset.pattern.permute.xlu0 %v111
    %113 = vperm.xlu0 %112, %v24
    %v114 = vpop.permute.xlu0 %113
    %v115 = vlaneseq
    %v116 = vshrl.u32 %v115, 7
    %v117 = vadd.s32 %v116, 120
    %118 = vset.pattern.permute.xlu0 %v117
    %119 = vperm.xlu0 %118, %v24
    %v120 = vpop.permute.xlu0 %119
    %v121 = vperm.slane %v23, 1
    %v122 = vlaneseq
    %v123 = vshrl.u32 %v122, 7
    %125 = vset.pattern.permute.xlu0 %v123
    %126 = vperm.xlu0 %125, %v121
    %v127 = vpop.permute.xlu0 %126
    %v128 = vlaneseq
    %v129 = vshrl.u32 %v128, 7
    %v130 = vadd.s32 %v129, 8
    %131 = vset.pattern.permute.xlu0 %v130
    %132 = vperm.xlu0 %131, %v121
    %v133 = vpop.permute.xlu0 %132
    %v134 = vlaneseq
    %v135 = vshrl.u32 %v134, 7
    %v136 = vadd.s32 %v135, 16
    %137 = vset.pattern.permute.xlu0 %v136
    %138 = vperm.xlu0 %137, %v121
    %v139 = vpop.permute.xlu0 %138
    %v140 = vlaneseq
    %v141 = vshrl.u32 %v140, 7
    %v142 = vadd.s32 %v141, 24
    %143 = vset.pattern.permute.xlu0 %v142
    %144 = vperm.xlu0 %143, %v121
    %v145 = vpop.permute.xlu0 %144
    %v146 = vlaneseq
    %v147 = vshrl.u32 %v146, 7
    %v148 = vadd.s32 %v147, 32
    %149 = vset.pattern.permute.xlu0 %v148
    %150 = vperm.xlu0 %149, %v121
    %v151 = vpop.permute.xlu0 %150
    %v152 = vlaneseq
    %v153 = vshrl.u32 %v152, 7
    %v154 = vadd.s32 %v153, 40
    %155 = vset.pattern.permute.xlu0 %v154
    %156 = vperm.xlu0 %155, %v121
    %v157 = vpop.permute.xlu0 %156
    %v158 = vlaneseq
    %v159 = vshrl.u32 %v158, 7
    %v160 = vadd.s32 %v159, 48
    %161 = vset.pattern.permute.xlu0 %v160
    %162 = vperm.xlu0 %161, %v121
    %v163 = vpop.permute.xlu0 %162
    %v164 = vlaneseq
    %v165 = vshrl.u32 %v164, 7
    %v166 = vadd.s32 %v165, 56
    %167 = vset.pattern.permute.xlu0 %v166
    %168 = vperm.xlu0 %167, %v121
    %v169 = vpop.permute.xlu0 %168
    %v170 = vlaneseq
    %v171 = vshrl.u32 %v170, 7
    %v172 = vadd.s32 %v171, 64
    %173 = vset.pattern.permute.xlu0 %v172
    %174 = vperm.xlu0 %173, %v121
    %v175 = vpop.permute.xlu0 %174
    %v176 = vlaneseq
    %v177 = vshrl.u32 %v176, 7
    %v178 = vadd.s32 %v177, 72
    %179 = vset.pattern.permute.xlu0 %v178
    %180 = vperm.xlu0 %179, %v121
    %v181 = vpop.permute.xlu0 %180
    %v182 = vlaneseq
    %v183 = vshrl.u32 %v182, 7
    %v184 = vadd.s32 %v183, 80
    %185 = vset.pattern.permute.xlu0 %v184
    %186 = vperm.xlu0 %185, %v121
    %v187 = vpop.permute.xlu0 %186
    %v188 = vlaneseq
    %v189 = vshrl.u32 %v188, 7
    %v190 = vadd.s32 %v189, 88
    %191 = vset.pattern.permute.xlu0 %v190
    %192 = vperm.xlu0 %191, %v121
    %v193 = vpop.permute.xlu0 %192
    %v194 = vlaneseq
    %v195 = vshrl.u32 %v194, 7
    %v196 = vadd.s32 %v195, 96
    %197 = vset.pattern.permute.xlu0 %v196
    %198 = vperm.xlu0 %197, %v121
    %v199 = vpop.permute.xlu0 %198
    %v200 = vlaneseq
    %v201 = vshrl.u32 %v200, 7
    %v202 = vadd.s32 %v201, 104
    %203 = vset.pattern.permute.xlu0 %v202
    %204 = vperm.xlu0 %203, %v121
    %v205 = vpop.permute.xlu0 %204
    %v206 = vlaneseq
    %v207 = vshrl.u32 %v206, 7
    %v208 = vadd.s32 %v207, 112
    %209 = vset.pattern.permute.xlu0 %v208
    %210 = vperm.xlu0 %209, %v121
    %v211 = vpop.permute.xlu0 %210
    %v212 = vlaneseq
    %v213 = vshrl.u32 %v212, 7
    %v214 = vadd.s32 %v213, 120
    %215 = vset.pattern.permute.xlu0 %v214
    %216 = vperm.xlu0 %215, %v121
    %v217 = vpop.permute.xlu0 %216
    %v218 = vperm.slane %v23, 2
    %v219 = vlaneseq
    %v220 = vshrl.u32 %v219, 7
    %222 = vset.pattern.permute.xlu0 %v220
    %223 = vperm.xlu0 %222, %v218
    %v224 = vpop.permute.xlu0 %223
    %v225 = vlaneseq
    %v226 = vshrl.u32 %v225, 7
    %v227 = vadd.s32 %v226, 8
    %228 = vset.pattern.permute.xlu0 %v227
    %229 = vperm.xlu0 %228, %v218
    %v230 = vpop.permute.xlu0 %229
    %v231 = vlaneseq
    %v232 = vshrl.u32 %v231, 7
    %v233 = vadd.s32 %v232, 16
    %234 = vset.pattern.permute.xlu0 %v233
    %235 = vperm.xlu0 %234, %v218
    %v236 = vpop.permute.xlu0 %235
    %v237 = vlaneseq
    %v238 = vshrl.u32 %v237, 7
    %v239 = vadd.s32 %v238, 24
    %240 = vset.pattern.permute.xlu0 %v239
    %241 = vperm.xlu0 %240, %v218
    %v242 = vpop.permute.xlu0 %241
    %v243 = vlaneseq
    %v244 = vshrl.u32 %v243, 7
    %v245 = vadd.s32 %v244, 32
    %246 = vset.pattern.permute.xlu0 %v245
    %247 = vperm.xlu0 %246, %v218
    %v248 = vpop.permute.xlu0 %247
    %v249 = vlaneseq
    %v250 = vshrl.u32 %v249, 7
    %v251 = vadd.s32 %v250, 40
    %252 = vset.pattern.permute.xlu0 %v251
    %253 = vperm.xlu0 %252, %v218
    %v254 = vpop.permute.xlu0 %253
    %v255 = vlaneseq
    %v256 = vshrl.u32 %v255, 7
    %v257 = vadd.s32 %v256, 48
    %258 = vset.pattern.permute.xlu0 %v257
    %259 = vperm.xlu0 %258, %v218
    %v260 = vpop.permute.xlu0 %259
    %v261 = vlaneseq
    %v262 = vshrl.u32 %v261, 7
    %v263 = vadd.s32 %v262, 56
    %264 = vset.pattern.permute.xlu0 %v263
    %265 = vperm.xlu0 %264, %v218
    %v266 = vpop.permute.xlu0 %265
    %v267 = vlaneseq
    %v268 = vshrl.u32 %v267, 7
    %v269 = vadd.s32 %v268, 64
    %270 = vset.pattern.permute.xlu0 %v269
    %271 = vperm.xlu0 %270, %v218
    %v272 = vpop.permute.xlu0 %271
    %v273 = vlaneseq
    %v274 = vshrl.u32 %v273, 7
    %v275 = vadd.s32 %v274, 72
    %276 = vset.pattern.permute.xlu0 %v275
    %277 = vperm.xlu0 %276, %v218
    %v278 = vpop.permute.xlu0 %277
    %v279 = vlaneseq
    %v280 = vshrl.u32 %v279, 7
    %v281 = vadd.s32 %v280, 80
    %282 = vset.pattern.permute.xlu0 %v281
    %283 = vperm.xlu0 %282, %v218
    %v284 = vpop.permute.xlu0 %283
    %v285 = vlaneseq
    %v286 = vshrl.u32 %v285, 7
    %v287 = vadd.s32 %v286, 88
    %288 = vset.pattern.permute.xlu0 %v287
    %289 = vperm.xlu0 %288, %v218
    %v290 = vpop.permute.xlu0 %289
    %v291 = vlaneseq
    %v292 = vshrl.u32 %v291, 7
    %v293 = vadd.s32 %v292, 96
    %294 = vset.pattern.permute.xlu0 %v293
    %295 = vperm.xlu0 %294, %v218
    %v296 = vpop.permute.xlu0 %295
    %v297 = vlaneseq
    %v298 = vshrl.u32 %v297, 7
    %v299 = vadd.s32 %v298, 104
    %300 = vset.pattern.permute.xlu0 %v299
    %301 = vperm.xlu0 %300, %v218
    %v302 = vpop.permute.xlu0 %301
    %v303 = vlaneseq
    %v304 = vshrl.u32 %v303, 7
    %v305 = vadd.s32 %v304, 112
    %306 = vset.pattern.permute.xlu0 %v305
    %307 = vperm.xlu0 %306, %v218
    %v308 = vpop.permute.xlu0 %307
    %v309 = vlaneseq
    %v310 = vshrl.u32 %v309, 7
    %v311 = vadd.s32 %v310, 120
    %312 = vset.pattern.permute.xlu0 %v311
    %313 = vperm.xlu0 %312, %v218
    %v314 = vpop.permute.xlu0 %313
    %v315 = vperm.slane %v23, 3
    %v316 = vlaneseq
    %v317 = vshrl.u32 %v316, 7
    %319 = vset.pattern.permute.xlu0 %v317
    %320 = vperm.xlu0 %319, %v315
    %v321 = vpop.permute.xlu0 %320
    %v322 = vlaneseq
    %v323 = vshrl.u32 %v322, 7
    %v324 = vadd.s32 %v323, 8
    %325 = vset.pattern.permute.xlu0 %v324
    %326 = vperm.xlu0 %325, %v315
    %v327 = vpop.permute.xlu0 %326
    %v328 = vlaneseq
    %v329 = vshrl.u32 %v328, 7
    %v330 = vadd.s32 %v329, 16
    %331 = vset.pattern.permute.xlu0 %v330
    %332 = vperm.xlu0 %331, %v315
    %v333 = vpop.permute.xlu0 %332
    %v334 = vlaneseq
    %v335 = vshrl.u32 %v334, 7
    %v336 = vadd.s32 %v335, 24
    %337 = vset.pattern.permute.xlu0 %v336
    %338 = vperm.xlu0 %337, %v315
    %v339 = vpop.permute.xlu0 %338
    %v340 = vlaneseq
    %v341 = vshrl.u32 %v340, 7
    %v342 = vadd.s32 %v341, 32
    %343 = vset.pattern.permute.xlu0 %v342
    %344 = vperm.xlu0 %343, %v315
    %v345 = vpop.permute.xlu0 %344
    %v346 = vlaneseq
    %v347 = vshrl.u32 %v346, 7
    %v348 = vadd.s32 %v347, 40
    %349 = vset.pattern.permute.xlu0 %v348
    %350 = vperm.xlu0 %349, %v315
    %v351 = vpop.permute.xlu0 %350
    %v352 = vlaneseq
    %v353 = vshrl.u32 %v352, 7
    %v354 = vadd.s32 %v353, 48
    %355 = vset.pattern.permute.xlu0 %v354
    %356 = vperm.xlu0 %355, %v315
    %v357 = vpop.permute.xlu0 %356
    %v358 = vlaneseq
    %v359 = vshrl.u32 %v358, 7
    %v360 = vadd.s32 %v359, 56
    %361 = vset.pattern.permute.xlu0 %v360
    %362 = vperm.xlu0 %361, %v315
    %v363 = vpop.permute.xlu0 %362
    %v364 = vlaneseq
    %v365 = vshrl.u32 %v364, 7
    %v366 = vadd.s32 %v365, 64
    %367 = vset.pattern.permute.xlu0 %v366
    %368 = vperm.xlu0 %367, %v315
    %v369 = vpop.permute.xlu0 %368
    %v370 = vlaneseq
    %v371 = vshrl.u32 %v370, 7
    %v372 = vadd.s32 %v371, 72
    %373 = vset.pattern.permute.xlu0 %v372
    %374 = vperm.xlu0 %373, %v315
    %v375 = vpop.permute.xlu0 %374
    %v376 = vlaneseq
    %v377 = vshrl.u32 %v376, 7
    %v378 = vadd.s32 %v377, 80
    %379 = vset.pattern.permute.xlu0 %v378
    %380 = vperm.xlu0 %379, %v315
    %v381 = vpop.permute.xlu0 %380
    %v382 = vlaneseq
    %v383 = vshrl.u32 %v382, 7
    %v384 = vadd.s32 %v383, 88
    %385 = vset.pattern.permute.xlu0 %v384
    %386 = vperm.xlu0 %385, %v315
    %v387 = vpop.permute.xlu0 %386
    %v388 = vlaneseq
    %v389 = vshrl.u32 %v388, 7
    %v390 = vadd.s32 %v389, 96
    %391 = vset.pattern.permute.xlu0 %v390
    %392 = vperm.xlu0 %391, %v315
    %v393 = vpop.permute.xlu0 %392
    %v394 = vlaneseq
    %v395 = vshrl.u32 %v394, 7
    %v396 = vadd.s32 %v395, 104
    %397 = vset.pattern.permute.xlu0 %v396
    %398 = vperm.xlu0 %397, %v315
    %v399 = vpop.permute.xlu0 %398
    %v400 = vlaneseq
    %v401 = vshrl.u32 %v400, 7
    %v402 = vadd.s32 %v401, 112
    %403 = vset.pattern.permute.xlu0 %v402
    %404 = vperm.xlu0 %403, %v315
    %v405 = vpop.permute.xlu0 %404
    %v406 = vlaneseq
    %v407 = vshrl.u32 %v406, 7
    %v408 = vadd.s32 %v407, 120
    %409 = vset.pattern.permute.xlu0 %v408
    %410 = vperm.xlu0 %409, %v315
    %v411 = vpop.permute.xlu0 %410
    %v412 = vperm.slane %v23, 4
    %v413 = vlaneseq
    %v414 = vshrl.u32 %v413, 7
    %416 = vset.pattern.permute.xlu0 %v414
    %417 = vperm.xlu0 %416, %v412
    %v418 = vpop.permute.xlu0 %417
    %v419 = vlaneseq
    %v420 = vshrl.u32 %v419, 7
    %v421 = vadd.s32 %v420, 8
    %422 = vset.pattern.permute.xlu0 %v421
    %423 = vperm.xlu0 %422, %v412
    %v424 = vpop.permute.xlu0 %423
    %v425 = vlaneseq
    %v426 = vshrl.u32 %v425, 7
    %v427 = vadd.s32 %v426, 16
    %428 = vset.pattern.permute.xlu0 %v427
    %429 = vperm.xlu0 %428, %v412
    %v430 = vpop.permute.xlu0 %429
    %v431 = vlaneseq
    %v432 = vshrl.u32 %v431, 7
    %v433 = vadd.s32 %v432, 24
    %434 = vset.pattern.permute.xlu0 %v433
    %435 = vperm.xlu0 %434, %v412
    %v436 = vpop.permute.xlu0 %435
    %v437 = vlaneseq
    %v438 = vshrl.u32 %v437, 7
    %v439 = vadd.s32 %v438, 32
    %440 = vset.pattern.permute.xlu0 %v439
    %441 = vperm.xlu0 %440, %v412
    %v442 = vpop.permute.xlu0 %441
    %v443 = vlaneseq
    %v444 = vshrl.u32 %v443, 7
    %v445 = vadd.s32 %v444, 40
    %446 = vset.pattern.permute.xlu0 %v445
    %447 = vperm.xlu0 %446, %v412
    %v448 = vpop.permute.xlu0 %447
    %v449 = vlaneseq
    %v450 = vshrl.u32 %v449, 7
    %v451 = vadd.s32 %v450, 48
    %452 = vset.pattern.permute.xlu0 %v451
    %453 = vperm.xlu0 %452, %v412
    %v454 = vpop.permute.xlu0 %453
    %v455 = vlaneseq
    %v456 = vshrl.u32 %v455, 7
    %v457 = vadd.s32 %v456, 56
    %458 = vset.pattern.permute.xlu0 %v457
    %459 = vperm.xlu0 %458, %v412
    %v460 = vpop.permute.xlu0 %459
    %v461 = vlaneseq
    %v462 = vshrl.u32 %v461, 7
    %v463 = vadd.s32 %v462, 64
    %464 = vset.pattern.permute.xlu0 %v463
    %465 = vperm.xlu0 %464, %v412
    %v466 = vpop.permute.xlu0 %465
    %v467 = vlaneseq
    %v468 = vshrl.u32 %v467, 7
    %v469 = vadd.s32 %v468, 72
    %470 = vset.pattern.permute.xlu0 %v469
    %471 = vperm.xlu0 %470, %v412
    %v472 = vpop.permute.xlu0 %471
    %v473 = vlaneseq
    %v474 = vshrl.u32 %v473, 7
    %v475 = vadd.s32 %v474, 80
    %476 = vset.pattern.permute.xlu0 %v475
    %477 = vperm.xlu0 %476, %v412
    %v478 = vpop.permute.xlu0 %477
    %v479 = vlaneseq
    %v480 = vshrl.u32 %v479, 7
    %v481 = vadd.s32 %v480, 88
    %482 = vset.pattern.permute.xlu0 %v481
    %483 = vperm.xlu0 %482, %v412
    %v484 = vpop.permute.xlu0 %483
    %v485 = vlaneseq
    %v486 = vshrl.u32 %v485, 7
    %v487 = vadd.s32 %v486, 96
    %488 = vset.pattern.permute.xlu0 %v487
    %489 = vperm.xlu0 %488, %v412
    %v490 = vpop.permute.xlu0 %489
    %v491 = vlaneseq
    %v492 = vshrl.u32 %v491, 7
    %v493 = vadd.s32 %v492, 104
    %494 = vset.pattern.permute.xlu0 %v493
    %495 = vperm.xlu0 %494, %v412
    %v496 = vpop.permute.xlu0 %495
    %v497 = vlaneseq
    %v498 = vshrl.u32 %v497, 7
    %v499 = vadd.s32 %v498, 112
    %500 = vset.pattern.permute.xlu0 %v499
    %501 = vperm.xlu0 %500, %v412
    %v502 = vpop.permute.xlu0 %501
    %v503 = vlaneseq
    %v504 = vshrl.u32 %v503, 7
    %v505 = vadd.s32 %v504, 120
    %506 = vset.pattern.permute.xlu0 %v505
    %507 = vperm.xlu0 %506, %v412
    %v508 = vpop.permute.xlu0 %507
    %v509 = vperm.slane %v23, 5
    %v510 = vlaneseq
    %v511 = vshrl.u32 %v510, 7
    %513 = vset.pattern.permute.xlu0 %v511
    %514 = vperm.xlu0 %513, %v509
    %v515 = vpop.permute.xlu0 %514
    %v516 = vlaneseq
    %v517 = vshrl.u32 %v516, 7
    %v518 = vadd.s32 %v517, 8
    %519 = vset.pattern.permute.xlu0 %v518
    %520 = vperm.xlu0 %519, %v509
    %v521 = vpop.permute.xlu0 %520
    %v522 = vlaneseq
    %v523 = vshrl.u32 %v522, 7
    %v524 = vadd.s32 %v523, 16
    %525 = vset.pattern.permute.xlu0 %v524
    %526 = vperm.xlu0 %525, %v509
    %v527 = vpop.permute.xlu0 %526
    %v528 = vlaneseq
    %v529 = vshrl.u32 %v528, 7
    %v530 = vadd.s32 %v529, 24
    %531 = vset.pattern.permute.xlu0 %v530
    %532 = vperm.xlu0 %531, %v509
    %v533 = vpop.permute.xlu0 %532
    %v534 = vlaneseq
    %v535 = vshrl.u32 %v534, 7
    %v536 = vadd.s32 %v535, 32
    %537 = vset.pattern.permute.xlu0 %v536
    %538 = vperm.xlu0 %537, %v509
    %v539 = vpop.permute.xlu0 %538
    %v540 = vlaneseq
    %v541 = vshrl.u32 %v540, 7
    %v542 = vadd.s32 %v541, 40
    %543 = vset.pattern.permute.xlu0 %v542
    %544 = vperm.xlu0 %543, %v509
    %v545 = vpop.permute.xlu0 %544
    %v546 = vlaneseq
    %v547 = vshrl.u32 %v546, 7
    %v548 = vadd.s32 %v547, 48
    %549 = vset.pattern.permute.xlu0 %v548
    %550 = vperm.xlu0 %549, %v509
    %v551 = vpop.permute.xlu0 %550
    %v552 = vlaneseq
    %v553 = vshrl.u32 %v552, 7
    %v554 = vadd.s32 %v553, 56
    %555 = vset.pattern.permute.xlu0 %v554
    %556 = vperm.xlu0 %555, %v509
    %v557 = vpop.permute.xlu0 %556
    %v558 = vlaneseq
    %v559 = vshrl.u32 %v558, 7
    %v560 = vadd.s32 %v559, 64
    %561 = vset.pattern.permute.xlu0 %v560
    %562 = vperm.xlu0 %561, %v509
    %v563 = vpop.permute.xlu0 %562
    %v564 = vlaneseq
    %v565 = vshrl.u32 %v564, 7
    %v566 = vadd.s32 %v565, 72
    %567 = vset.pattern.permute.xlu0 %v566
    %568 = vperm.xlu0 %567, %v509
    %v569 = vpop.permute.xlu0 %568
    %v570 = vlaneseq
    %v571 = vshrl.u32 %v570, 7
    %v572 = vadd.s32 %v571, 80
    %573 = vset.pattern.permute.xlu0 %v572
    %574 = vperm.xlu0 %573, %v509
    %v575 = vpop.permute.xlu0 %574
    %v576 = vlaneseq
    %v577 = vshrl.u32 %v576, 7
    %v578 = vadd.s32 %v577, 88
    %579 = vset.pattern.permute.xlu0 %v578
    %580 = vperm.xlu0 %579, %v509
    %v581 = vpop.permute.xlu0 %580
    %v582 = vlaneseq
    %v583 = vshrl.u32 %v582, 7
    %v584 = vadd.s32 %v583, 96
    %585 = vset.pattern.permute.xlu0 %v584
    %586 = vperm.xlu0 %585, %v509
    %v587 = vpop.permute.xlu0 %586
    %v588 = vlaneseq
    %v589 = vshrl.u32 %v588, 7
    %v590 = vadd.s32 %v589, 104
    %591 = vset.pattern.permute.xlu0 %v590
    %592 = vperm.xlu0 %591, %v509
    %v593 = vpop.permute.xlu0 %592
    %v594 = vlaneseq
    %v595 = vshrl.u32 %v594, 7
    %v596 = vadd.s32 %v595, 112
    %597 = vset.pattern.permute.xlu0 %v596
    %598 = vperm.xlu0 %597, %v509
    %v599 = vpop.permute.xlu0 %598
    %v600 = vlaneseq
    %v601 = vshrl.u32 %v600, 7
    %v602 = vadd.s32 %v601, 120
    %603 = vset.pattern.permute.xlu0 %v602
    %604 = vperm.xlu0 %603, %v509
    %v605 = vpop.permute.xlu0 %604
    %v606 = vperm.slane %v23, 6
    %v607 = vlaneseq
    %v608 = vshrl.u32 %v607, 7
    %610 = vset.pattern.permute.xlu0 %v608
    %611 = vperm.xlu0 %610, %v606
    %v612 = vpop.permute.xlu0 %611
    %v613 = vlaneseq
    %v614 = vshrl.u32 %v613, 7
    %v615 = vadd.s32 %v614, 8
    %616 = vset.pattern.permute.xlu0 %v615
    %617 = vperm.xlu0 %616, %v606
    %v618 = vpop.permute.xlu0 %617
    %v619 = vlaneseq
    %v620 = vshrl.u32 %v619, 7
    %v621 = vadd.s32 %v620, 16
    %622 = vset.pattern.permute.xlu0 %v621
    %623 = vperm.xlu0 %622, %v606
    %v624 = vpop.permute.xlu0 %623
    %v625 = vlaneseq
    %v626 = vshrl.u32 %v625, 7
    %v627 = vadd.s32 %v626, 24
    %628 = vset.pattern.permute.xlu0 %v627
    %629 = vperm.xlu0 %628, %v606
    %v630 = vpop.permute.xlu0 %629
    %v631 = vlaneseq
    %v632 = vshrl.u32 %v631, 7
    %v633 = vadd.s32 %v632, 32
    %634 = vset.pattern.permute.xlu0 %v633
    %635 = vperm.xlu0 %634, %v606
    %v636 = vpop.permute.xlu0 %635
    %v637 = vlaneseq
    %v638 = vshrl.u32 %v637, 7
    %v639 = vadd.s32 %v638, 40
    %640 = vset.pattern.permute.xlu0 %v639
    %641 = vperm.xlu0 %640, %v606
    %v642 = vpop.permute.xlu0 %641
    %v643 = vlaneseq
    %v644 = vshrl.u32 %v643, 7
    %v645 = vadd.s32 %v644, 48
    %646 = vset.pattern.permute.xlu0 %v645
    %647 = vperm.xlu0 %646, %v606
    %v648 = vpop.permute.xlu0 %647
    %v649 = vlaneseq
    %v650 = vshrl.u32 %v649, 7
    %v651 = vadd.s32 %v650, 56
    %652 = vset.pattern.permute.xlu0 %v651
    %653 = vperm.xlu0 %652, %v606
    %v654 = vpop.permute.xlu0 %653
    %v655 = vlaneseq
    %v656 = vshrl.u32 %v655, 7
    %v657 = vadd.s32 %v656, 64
    %658 = vset.pattern.permute.xlu0 %v657
    %659 = vperm.xlu0 %658, %v606
    %v660 = vpop.permute.xlu0 %659
    %v661 = vlaneseq
    %v662 = vshrl.u32 %v661, 7
    %v663 = vadd.s32 %v662, 72
    %664 = vset.pattern.permute.xlu0 %v663
    %665 = vperm.xlu0 %664, %v606
    %v666 = vpop.permute.xlu0 %665
    %v667 = vlaneseq
    %v668 = vshrl.u32 %v667, 7
    %v669 = vadd.s32 %v668, 80
    %670 = vset.pattern.permute.xlu0 %v669
    %671 = vperm.xlu0 %670, %v606
    %v672 = vpop.permute.xlu0 %671
    %v673 = vlaneseq
    %v674 = vshrl.u32 %v673, 7
    %v675 = vadd.s32 %v674, 88
    %676 = vset.pattern.permute.xlu0 %v675
    %677 = vperm.xlu0 %676, %v606
    %v678 = vpop.permute.xlu0 %677
    %v679 = vlaneseq
    %v680 = vshrl.u32 %v679, 7
    %v681 = vadd.s32 %v680, 96
    %682 = vset.pattern.permute.xlu0 %v681
    %683 = vperm.xlu0 %682, %v606
    %v684 = vpop.permute.xlu0 %683
    %v685 = vlaneseq
    %v686 = vshrl.u32 %v685, 7
    %v687 = vadd.s32 %v686, 104
    %688 = vset.pattern.permute.xlu0 %v687
    %689 = vperm.xlu0 %688, %v606
    %v690 = vpop.permute.xlu0 %689
    %v691 = vlaneseq
    %v692 = vshrl.u32 %v691, 7
    %v693 = vadd.s32 %v692, 112
    %694 = vset.pattern.permute.xlu0 %v693
    %695 = vperm.xlu0 %694, %v606
    %v696 = vpop.permute.xlu0 %695
    %v697 = vlaneseq
    %v698 = vshrl.u32 %v697, 7
    %v699 = vadd.s32 %v698, 120
    %700 = vset.pattern.permute.xlu0 %v699
    %701 = vperm.xlu0 %700, %v606
    %v702 = vpop.permute.xlu0 %701
    %v703 = vperm.slane %v23, 7
    %v704 = vlaneseq
    %v705 = vshrl.u32 %v704, 7
    %707 = vset.pattern.permute.xlu0 %v705
    %708 = vperm.xlu0 %707, %v703
    %v709 = vpop.permute.xlu0 %708
    %v710 = vlaneseq
    %v711 = vshrl.u32 %v710, 7
    %v712 = vadd.s32 %v711, 8
    %713 = vset.pattern.permute.xlu0 %v712
    %714 = vperm.xlu0 %713, %v703
    %v715 = vpop.permute.xlu0 %714
    %v716 = vlaneseq
    %v717 = vshrl.u32 %v716, 7
    %v718 = vadd.s32 %v717, 16
    %719 = vset.pattern.permute.xlu0 %v718
    %720 = vperm.xlu0 %719, %v703
    %v721 = vpop.permute.xlu0 %720
    %v722 = vlaneseq
    %v723 = vshrl.u32 %v722, 7
    %v724 = vadd.s32 %v723, 24
    %725 = vset.pattern.permute.xlu0 %v724
    %726 = vperm.xlu0 %725, %v703
    %v727 = vpop.permute.xlu0 %726
    %v728 = vlaneseq
    %v729 = vshrl.u32 %v728, 7
    %v730 = vadd.s32 %v729, 32
    %731 = vset.pattern.permute.xlu0 %v730
    %732 = vperm.xlu0 %731, %v703
    %v733 = vpop.permute.xlu0 %732
    %v734 = vlaneseq
    %v735 = vshrl.u32 %v734, 7
    %v736 = vadd.s32 %v735, 40
    %737 = vset.pattern.permute.xlu0 %v736
    %738 = vperm.xlu0 %737, %v703
    %v739 = vpop.permute.xlu0 %738
    %v740 = vlaneseq
    %v741 = vshrl.u32 %v740, 7
    %v742 = vadd.s32 %v741, 48
    %743 = vset.pattern.permute.xlu0 %v742
    %744 = vperm.xlu0 %743, %v703
    %v745 = vpop.permute.xlu0 %744
    %v746 = vlaneseq
    %v747 = vshrl.u32 %v746, 7
    %v748 = vadd.s32 %v747, 56
    %749 = vset.pattern.permute.xlu0 %v748
    %750 = vperm.xlu0 %749, %v703
    %v751 = vpop.permute.xlu0 %750
    %v752 = vlaneseq
    %v753 = vshrl.u32 %v752, 7
    %v754 = vadd.s32 %v753, 64
    %755 = vset.pattern.permute.xlu0 %v754
    %756 = vperm.xlu0 %755, %v703
    %v757 = vpop.permute.xlu0 %756
    %v758 = vlaneseq
    %v759 = vshrl.u32 %v758, 7
    %v760 = vadd.s32 %v759, 72
    %761 = vset.pattern.permute.xlu0 %v760
    %762 = vperm.xlu0 %761, %v703
    %v763 = vpop.permute.xlu0 %762
    %v764 = vlaneseq
    %v765 = vshrl.u32 %v764, 7
    %v766 = vadd.s32 %v765, 80
    %767 = vset.pattern.permute.xlu0 %v766
    %768 = vperm.xlu0 %767, %v703
    %v769 = vpop.permute.xlu0 %768
    %v770 = vlaneseq
    %v771 = vshrl.u32 %v770, 7
    %v772 = vadd.s32 %v771, 88
    %773 = vset.pattern.permute.xlu0 %v772
    %774 = vperm.xlu0 %773, %v703
    %v775 = vpop.permute.xlu0 %774
    %v776 = vlaneseq
    %v777 = vshrl.u32 %v776, 7
    %v778 = vadd.s32 %v777, 96
    %779 = vset.pattern.permute.xlu0 %v778
    %780 = vperm.xlu0 %779, %v703
    %v781 = vpop.permute.xlu0 %780
    %v782 = vlaneseq
    %v783 = vshrl.u32 %v782, 7
    %v784 = vadd.s32 %v783, 104
    %785 = vset.pattern.permute.xlu0 %v784
    %786 = vperm.xlu0 %785, %v703
    %v787 = vpop.permute.xlu0 %786
    %v788 = vlaneseq
    %v789 = vshrl.u32 %v788, 7
    %v790 = vadd.s32 %v789, 112
    %791 = vset.pattern.permute.xlu0 %v790
    %792 = vperm.xlu0 %791, %v703
    %v793 = vpop.permute.xlu0 %792
    %v794 = vlaneseq
    %v795 = vshrl.u32 %v794, 7
    %v796 = vadd.s32 %v795, 120
    %797 = vset.pattern.permute.xlu0 %v796
    %798 = vperm.xlu0 %797, %v703
    %v799 = vpop.permute.xlu0 %798
    %v801 = vrot.slane %v23, 1
    %v802 = vrot.slane %v23, 2
    %v803 = vrot.slane %v23, 3
    %v804 = vrot.slane %v23, 4
    %v805 = vrot.slane %v23, 5
    %v806 = vrot.slane %v23, 6
    %v807 = vrot.slane %v23, 7
    %v808 = vperm.slane %v23, 0
    %v809 = vperm.slane %v801, 0
    %v810 = vperm.slane %v802, 0
    %v811 = vperm.slane %v803, 0
    %v812 = vperm.slane %v804, 0
    %v813 = vperm.slane %v805, 0
    %v814 = vperm.slane %v806, 0
    %v815 = vperm.slane %v807, 0
    %v824 = vsub.f32 %v30, %v808
    %v825 = vsub.f32 %v36, %v808
    %v826 = vsub.f32 %v42, %v808
    %v827 = vsub.f32 %v48, %v808
    %v828 = vsub.f32 %v54, %v808
    %v829 = vsub.f32 %v60, %v808
    %v830 = vsub.f32 %v66, %v808
    %v831 = vsub.f32 %v72, %v808
    %v832 = vsub.f32 %v78, %v808
    %v833 = vsub.f32 %v84, %v808
    %v834 = vsub.f32 %v90, %v808
    %v835 = vsub.f32 %v96, %v808
    %v836 = vsub.f32 %v102, %v808
    %v837 = vsub.f32 %v108, %v808
    %v838 = vsub.f32 %v114, %v808
    %v839 = vsub.f32 %v120, %v808
    %v840 = vsub.f32 %v127, %v809
    %v841 = vsub.f32 %v133, %v809
    %v842 = vsub.f32 %v139, %v809
    %v843 = vsub.f32 %v145, %v809
    %v844 = vsub.f32 %v151, %v809
    %v845 = vsub.f32 %v157, %v809
    %v846 = vsub.f32 %v163, %v809
    %v847 = vsub.f32 %v169, %v809
    %v848 = vsub.f32 %v175, %v809
    %v849 = vsub.f32 %v181, %v809
    %v850 = vsub.f32 %v187, %v809
    %v851 = vsub.f32 %v193, %v809
    %v852 = vsub.f32 %v199, %v809
    %v853 = vsub.f32 %v205, %v809
    %v854 = vsub.f32 %v211, %v809
    %v855 = vsub.f32 %v217, %v809
    %v856 = vsub.f32 %v224, %v810
    %v857 = vsub.f32 %v230, %v810
    %v858 = vsub.f32 %v236, %v810
    %v859 = vsub.f32 %v242, %v810
    %v860 = vsub.f32 %v248, %v810
    %v861 = vsub.f32 %v254, %v810
    %v862 = vsub.f32 %v260, %v810
    %v863 = vsub.f32 %v266, %v810
    %v864 = vsub.f32 %v272, %v810
    %v865 = vsub.f32 %v278, %v810
    %v866 = vsub.f32 %v284, %v810
    %v867 = vsub.f32 %v290, %v810
    %v868 = vsub.f32 %v296, %v810
    %v869 = vsub.f32 %v302, %v810
    %v870 = vsub.f32 %v308, %v810
    %v871 = vsub.f32 %v314, %v810
    %v872 = vsub.f32 %v321, %v811
    %v873 = vsub.f32 %v327, %v811
    %v874 = vsub.f32 %v333, %v811
    %v875 = vsub.f32 %v339, %v811
    %v876 = vsub.f32 %v345, %v811
    %v877 = vsub.f32 %v351, %v811
    %v878 = vsub.f32 %v357, %v811
    %v879 = vsub.f32 %v363, %v811
    %v880 = vsub.f32 %v369, %v811
    %v881 = vsub.f32 %v375, %v811
    %v882 = vsub.f32 %v381, %v811
    %v883 = vsub.f32 %v387, %v811
    %v884 = vsub.f32 %v393, %v811
    %v885 = vsub.f32 %v399, %v811
    %v886 = vsub.f32 %v405, %v811
    %v887 = vsub.f32 %v411, %v811
    %v888 = vsub.f32 %v418, %v812
    %v889 = vsub.f32 %v424, %v812
    %v890 = vsub.f32 %v430, %v812
    %v891 = vsub.f32 %v436, %v812
    %v892 = vsub.f32 %v442, %v812
    %v893 = vsub.f32 %v448, %v812
    %v894 = vsub.f32 %v454, %v812
    %v895 = vsub.f32 %v460, %v812
    %v896 = vsub.f32 %v466, %v812
    %v897 = vsub.f32 %v472, %v812
    %v898 = vsub.f32 %v478, %v812
    %v899 = vsub.f32 %v484, %v812
    %v900 = vsub.f32 %v490, %v812
    %v901 = vsub.f32 %v496, %v812
    %v902 = vsub.f32 %v502, %v812
    %v903 = vsub.f32 %v508, %v812
    %v904 = vsub.f32 %v515, %v813
    %v905 = vsub.f32 %v521, %v813
    %v906 = vsub.f32 %v527, %v813
    %v907 = vsub.f32 %v533, %v813
    %v908 = vsub.f32 %v539, %v813
    %v909 = vsub.f32 %v545, %v813
    %v910 = vsub.f32 %v551, %v813
    %v911 = vsub.f32 %v557, %v813
    %v912 = vsub.f32 %v563, %v813
    %v913 = vsub.f32 %v569, %v813
    %v914 = vsub.f32 %v575, %v813
    %v915 = vsub.f32 %v581, %v813
    %v916 = vsub.f32 %v587, %v813
    %v917 = vsub.f32 %v593, %v813
    %v918 = vsub.f32 %v599, %v813
    %v919 = vsub.f32 %v605, %v813
    %v920 = vsub.f32 %v612, %v814
    %v921 = vsub.f32 %v618, %v814
    %v922 = vsub.f32 %v624, %v814
    %v923 = vsub.f32 %v630, %v814
    %v924 = vsub.f32 %v636, %v814
    %v925 = vsub.f32 %v642, %v814
    %v926 = vsub.f32 %v648, %v814
    %v927 = vsub.f32 %v654, %v814
    %v928 = vsub.f32 %v660, %v814
    %v929 = vsub.f32 %v666, %v814
    %v930 = vsub.f32 %v672, %v814
    %v931 = vsub.f32 %v678, %v814
    %v932 = vsub.f32 %v684, %v814
    %v933 = vsub.f32 %v690, %v814
    %v934 = vsub.f32 %v696, %v814
    %v935 = vsub.f32 %v702, %v814
    %v936 = vsub.f32 %v709, %v815
    %v937 = vsub.f32 %v715, %v815
    %v938 = vsub.f32 %v721, %v815
    %v939 = vsub.f32 %v727, %v815
    %v940 = vsub.f32 %v733, %v815
    %v941 = vsub.f32 %v739, %v815
    %v942 = vsub.f32 %v745, %v815
    %v943 = vsub.f32 %v751, %v815
    %v944 = vsub.f32 %v757, %v815
    %v945 = vsub.f32 %v763, %v815
    %v946 = vsub.f32 %v769, %v815
    %v947 = vsub.f32 %v775, %v815
    %v948 = vsub.f32 %v781, %v815
    %v949 = vsub.f32 %v787, %v815
    %v950 = vsub.f32 %v793, %v815
    %v951 = vsub.f32 %v799, %v815
    %v952 = vand.u32 2147483647, %v824
    %v953 = vand.u32 2147483647, %v825
    %v954 = vand.u32 2147483647, %v826
    %v955 = vand.u32 2147483647, %v827
    %v956 = vand.u32 2147483647, %v828
    %v957 = vand.u32 2147483647, %v829
    %v958 = vand.u32 2147483647, %v830
    %v959 = vand.u32 2147483647, %v831
    %v960 = vand.u32 2147483647, %v832
    %v961 = vand.u32 2147483647, %v833
    %v962 = vand.u32 2147483647, %v834
    %v963 = vand.u32 2147483647, %v835
    %v964 = vand.u32 2147483647, %v836
    %v965 = vand.u32 2147483647, %v837
    %v966 = vand.u32 2147483647, %v838
    %v967 = vand.u32 2147483647, %v839
    %v968 = vand.u32 2147483647, %v840
    %v969 = vand.u32 2147483647, %v841
    %v970 = vand.u32 2147483647, %v842
    %v971 = vand.u32 2147483647, %v843
    %v972 = vand.u32 2147483647, %v844
    %v973 = vand.u32 2147483647, %v845
    %v974 = vand.u32 2147483647, %v846
    %v975 = vand.u32 2147483647, %v847
    %v976 = vand.u32 2147483647, %v848
    %v977 = vand.u32 2147483647, %v849
    %v978 = vand.u32 2147483647, %v850
    %v979 = vand.u32 2147483647, %v851
    %v980 = vand.u32 2147483647, %v852
    %v981 = vand.u32 2147483647, %v853
    %v982 = vand.u32 2147483647, %v854
    %v983 = vand.u32 2147483647, %v855
    %v984 = vand.u32 2147483647, %v856
    %v985 = vand.u32 2147483647, %v857
    %v986 = vand.u32 2147483647, %v858
    %v987 = vand.u32 2147483647, %v859
    %v988 = vand.u32 2147483647, %v860
    %v989 = vand.u32 2147483647, %v861
    %v990 = vand.u32 2147483647, %v862
    %v991 = vand.u32 2147483647, %v863
    %v992 = vand.u32 2147483647, %v864
    %v993 = vand.u32 2147483647, %v865
    %v994 = vand.u32 2147483647, %v866
    %v995 = vand.u32 2147483647, %v867
    %v996 = vand.u32 2147483647, %v868
    %v997 = vand.u32 2147483647, %v869
    %v998 = vand.u32 2147483647, %v870
    %v999 = vand.u32 2147483647, %v871
    %v1000 = vand.u32 2147483647, %v872
    %v1001 = vand.u32 2147483647, %v873
    %v1002 = vand.u32 2147483647, %v874
    %v1003 = vand.u32 2147483647, %v875
    %v1004 = vand.u32 2147483647, %v876
    %v1005 = vand.u32 2147483647, %v877
    %v1006 = vand.u32 2147483647, %v878
    %v1007 = vand.u32 2147483647, %v879
    %v1008 = vand.u32 2147483647, %v880
    %v1009 = vand.u32 2147483647, %v881
    %v1010 = vand.u32 2147483647, %v882
    %v1011 = vand.u32 2147483647, %v883
    %v1012 = vand.u32 2147483647, %v884
    %v1013 = vand.u32 2147483647, %v885
    %v1014 = vand.u32 2147483647, %v886
    %v1015 = vand.u32 2147483647, %v887
    %v1016 = vand.u32 2147483647, %v888
    %v1017 = vand.u32 2147483647, %v889
    %v1018 = vand.u32 2147483647, %v890
    %v1019 = vand.u32 2147483647, %v891
    %v1020 = vand.u32 2147483647, %v892
    %v1021 = vand.u32 2147483647, %v893
    %v1022 = vand.u32 2147483647, %v894
    %v1023 = vand.u32 2147483647, %v895
    %v1024 = vand.u32 2147483647, %v896
    %v1025 = vand.u32 2147483647, %v897
    %v1026 = vand.u32 2147483647, %v898
    %v1027 = vand.u32 2147483647, %v899
    %v1028 = vand.u32 2147483647, %v900
    %v1029 = vand.u32 2147483647, %v901
    %v1030 = vand.u32 2147483647, %v902
    %v1031 = vand.u32 2147483647, %v903
    %v1032 = vand.u32 2147483647, %v904
    %v1033 = vand.u32 2147483647, %v905
    %v1034 = vand.u32 2147483647, %v906
    %v1035 = vand.u32 2147483647, %v907
    %v1036 = vand.u32 2147483647, %v908
    %v1037 = vand.u32 2147483647, %v909
    %v1038 = vand.u32 2147483647, %v910
    %v1039 = vand.u32 2147483647, %v911
    %v1040 = vand.u32 2147483647, %v912
    %v1041 = vand.u32 2147483647, %v913
    %v1042 = vand.u32 2147483647, %v914
    %v1043 = vand.u32 2147483647, %v915
    %v1044 = vand.u32 2147483647, %v916
    %v1045 = vand.u32 2147483647, %v917
    %v1046 = vand.u32 2147483647, %v918
    %v1047 = vand.u32 2147483647, %v919
    %v1048 = vand.u32 2147483647, %v920
    %v1049 = vand.u32 2147483647, %v921
    %v1050 = vand.u32 2147483647, %v922
    %v1051 = vand.u32 2147483647, %v923
    %v1052 = vand.u32 2147483647, %v924
    %v1053 = vand.u32 2147483647, %v925
    %v1054 = vand.u32 2147483647, %v926
    %v1055 = vand.u32 2147483647, %v927
    %v1056 = vand.u32 2147483647, %v928
    %v1057 = vand.u32 2147483647, %v929
    %v1058 = vand.u32 2147483647, %v930
    %v1059 = vand.u32 2147483647, %v931
    %v1060 = vand.u32 2147483647, %v932
    %v1061 = vand.u32 2147483647, %v933
    %v1062 = vand.u32 2147483647, %v934
    %v1063 = vand.u32 2147483647, %v935
    %v1064 = vand.u32 2147483647, %v936
    %v1065 = vand.u32 2147483647, %v937
    %v1066 = vand.u32 2147483647, %v938
    %v1067 = vand.u32 2147483647, %v939
    %v1068 = vand.u32 2147483647, %v940
    %v1069 = vand.u32 2147483647, %v941
    %v1070 = vand.u32 2147483647, %v942
    %v1071 = vand.u32 2147483647, %v943
    %v1072 = vand.u32 2147483647, %v944
    %v1073 = vand.u32 2147483647, %v945
    %v1074 = vand.u32 2147483647, %v946
    %v1075 = vand.u32 2147483647, %v947
    %v1076 = vand.u32 2147483647, %v948
    %v1077 = vand.u32 2147483647, %v949
    %v1078 = vand.u32 2147483647, %v950
    %v1079 = vand.u32 2147483647, %v951
    %v1080 = vlaneseq
    %v1081 = vshrl.u32 %v1080, 7
    %v1082 = vadd.s32 %v1081, 8
    %v1083 = vadd.s32 %v1081, 16
    %v1084 = vadd.s32 %v1081, 24
    %v1085 = vadd.s32 %v1081, 32
    %v1086 = vadd.s32 %v1081, 40
    %v1087 = vadd.s32 %v1081, 48
    %v1088 = vadd.s32 %v1081, 56
    %v1089 = vadd.s32 %v1081, 64
    %v1090 = vadd.s32 %v1081, 72
    %v1091 = vadd.s32 %v1081, 80
    %v1092 = vadd.s32 %v1081, 88
    %v1093 = vadd.s32 %v1081, 96
    %v1094 = vadd.s32 %v1081, 104
    %v1095 = vadd.s32 %v1081, 112
    %v1096 = vadd.s32 %v1081, 120
    %v1097 = vlaneseq
    %v1098 = vand.u32 %v1097, 127
    %vm1099 = vcmp.le.s32.totalorder %v1081, %v1098
    %vm1100 = vcmp.le.s32.totalorder %v1082, %v1098
    %vm1101 = vcmp.le.s32.totalorder %v1083, %v1098
    %vm1102 = vcmp.le.s32.totalorder %v1084, %v1098
    %vm1103 = vcmp.le.s32.totalorder %v1085, %v1098
    %vm1104 = vcmp.le.s32.totalorder %v1086, %v1098
    %vm1105 = vcmp.le.s32.totalorder %v1087, %v1098
    %vm1106 = vcmp.le.s32.totalorder %v1088, %v1098
    %vm1107 = vcmp.le.s32.totalorder %v1089, %v1098
    %vm1108 = vcmp.le.s32.totalorder %v1090, %v1098
    %vm1109 = vcmp.le.s32.totalorder %v1091, %v1098
    %vm1110 = vcmp.le.s32.totalorder %v1092, %v1098
    %vm1111 = vcmp.le.s32.totalorder %v1093, %v1098
    %vm1112 = vcmp.le.s32.totalorder %v1094, %v1098
    %vm1113 = vcmp.le.s32.totalorder %v1095, %v1098
    %vm1114 = vcmp.le.s32.totalorder %v1096, %v1098
    %v1115 = vsel %vm1099, 0.25, 0.0
    %v1116 = vsel %vm1100, 0.25, 0.0
    %v1117 = vsel %vm1101, 0.25, 0.0
    %v1118 = vsel %vm1102, 0.25, 0.0
    %v1119 = vsel %vm1103, 0.25, 0.0
    %v1120 = vsel %vm1104, 0.25, 0.0
    %v1121 = vsel %vm1105, 0.25, 0.0
    %v1122 = vsel %vm1106, 0.25, 0.0
    %v1123 = vsel %vm1107, 0.25, 0.0
    %v1124 = vsel %vm1108, 0.25, 0.0
    %v1125 = vsel %vm1109, 0.25, 0.0
    %v1126 = vsel %vm1110, 0.25, 0.0
    %v1127 = vsel %vm1111, 0.25, 0.0
    %v1128 = vsel %vm1112, 0.25, 0.0
    %v1129 = vsel %vm1113, 0.25, 0.0
    %v1130 = vsel %vm1114, 0.25, 0.0
    %1131 = vmatpush.msra.mxu0 %v1130
    %1132 = vmatpush.msra.mxu0 %v1129
    %1133 = vmatpush.msra.mxu0 %v1128
    %1134 = vmatpush.msra.mxu0 %v1127
    %1135 = vmatpush.msra.mxu0 %v1126
    %1136 = vmatpush.msra.mxu0 %v1125
    %1137 = vmatpush.msra.mxu0 %v1124
    %1138 = vmatpush.msra.mxu0 %v1123
    %1139 = vmatpush.msra.mxu0 %v1122
    %1140 = vmatpush.msra.mxu0 %v1121
    %1141 = vmatpush.msra.mxu0 %v1120
    %1142 = vmatpush.msra.mxu0 %v1119
    %1143 = vmatpush.msra.mxu0 %v1118
    %1144 = vmatpush.msra.mxu0 %v1117
    %1145 = vmatpush.msra.mxu0 %v1116
    %1146 = vmatpush.msra.mxu0 %v1115
    %1147 = vmatmul.f32.gmra.mxu0 %v952
    %v1148 = vpop.f32.mrf.mxu0
    %v1149 = vadd.f32 0.0, %v1148
    %1150 = vmatmul.f32.gmra.mxu0 %v953
    %v1151 = vpop.f32.mrf.mxu0
    %v1152 = vadd.f32 0.0, %v1151
    %1153 = vmatmul.f32.gmra.mxu0 %v954
    %v1154 = vpop.f32.mrf.mxu0
    %v1155 = vadd.f32 0.0, %v1154
    %1156 = vmatmul.f32.gmra.mxu0 %v955
    %v1157 = vpop.f32.mrf.mxu0
    %v1158 = vadd.f32 0.0, %v1157
    %1159 = vmatmul.f32.gmra.mxu0 %v956
    %v1160 = vpop.f32.mrf.mxu0
    %v1161 = vadd.f32 0.0, %v1160
    %1162 = vmatmul.f32.gmra.mxu0 %v957
    %v1163 = vpop.f32.mrf.mxu0
    %v1164 = vadd.f32 0.0, %v1163
    %1165 = vmatmul.f32.gmra.mxu0 %v958
    %v1166 = vpop.f32.mrf.mxu0
    %v1167 = vadd.f32 0.0, %v1166
    %1168 = vmatmul.f32.gmra.mxu0 %v959
    %v1169 = vpop.f32.mrf.mxu0
    %v1170 = vadd.f32 0.0, %v1169
    %1171 = vmatmul.f32.gmra.mxu0 %v960
    %v1172 = vpop.f32.mrf.mxu0
    %v1173 = vadd.f32 0.0, %v1172
    %1174 = vmatmul.f32.gmra.mxu0 %v961
    %v1175 = vpop.f32.mrf.mxu0
    %v1176 = vadd.f32 0.0, %v1175
    %1177 = vmatmul.f32.gmra.mxu0 %v962
    %v1178 = vpop.f32.mrf.mxu0
    %v1179 = vadd.f32 0.0, %v1178
    %1180 = vmatmul.f32.gmra.mxu0 %v963
    %v1181 = vpop.f32.mrf.mxu0
    %v1182 = vadd.f32 0.0, %v1181
    %1183 = vmatmul.f32.gmra.mxu0 %v964
    %v1184 = vpop.f32.mrf.mxu0
    %v1185 = vadd.f32 0.0, %v1184
    %1186 = vmatmul.f32.gmra.mxu0 %v965
    %v1187 = vpop.f32.mrf.mxu0
    %v1188 = vadd.f32 0.0, %v1187
    %1189 = vmatmul.f32.gmra.mxu0 %v966
    %v1190 = vpop.f32.mrf.mxu0
    %v1191 = vadd.f32 0.0, %v1190
    %1192 = vmatmul.f32.gmra.mxu0 %v967
    %v1193 = vpop.f32.mrf.mxu0
    %v1194 = vadd.f32 0.0, %v1193
    %1195 = vmatmul.f32.gmra.mxu0 %v968
    %v1196 = vpop.f32.mrf.mxu0
    %v1197 = vadd.f32 0.0, %v1196
    %1198 = vmatmul.f32.gmra.mxu0 %v969
    %v1199 = vpop.f32.mrf.mxu0
    %v1200 = vadd.f32 0.0, %v1199
    %1201 = vmatmul.f32.gmra.mxu0 %v970
    %v1202 = vpop.f32.mrf.mxu0
    %v1203 = vadd.f32 0.0, %v1202
    %1204 = vmatmul.f32.gmra.mxu0 %v971
    %v1205 = vpop.f32.mrf.mxu0
    %v1206 = vadd.f32 0.0, %v1205
    %1207 = vmatmul.f32.gmra.mxu0 %v972
    %v1208 = vpop.f32.mrf.mxu0
    %v1209 = vadd.f32 0.0, %v1208
    %1210 = vmatmul.f32.gmra.mxu0 %v973
    %v1211 = vpop.f32.mrf.mxu0
    %v1212 = vadd.f32 0.0, %v1211
    %1213 = vmatmul.f32.gmra.mxu0 %v974
    %v1214 = vpop.f32.mrf.mxu0
    %v1215 = vadd.f32 0.0, %v1214
    %1216 = vmatmul.f32.gmra.mxu0 %v975
    %v1217 = vpop.f32.mrf.mxu0
    %v1218 = vadd.f32 0.0, %v1217
    %1219 = vmatmul.f32.gmra.mxu0 %v976
    %v1220 = vpop.f32.mrf.mxu0
    %v1221 = vadd.f32 0.0, %v1220
    %1222 = vmatmul.f32.gmra.mxu0 %v977
    %v1223 = vpop.f32.mrf.mxu0
    %v1224 = vadd.f32 0.0, %v1223
    %1225 = vmatmul.f32.gmra.mxu0 %v978
    %v1226 = vpop.f32.mrf.mxu0
    %v1227 = vadd.f32 0.0, %v1226
    %1228 = vmatmul.f32.gmra.mxu0 %v979
    %v1229 = vpop.f32.mrf.mxu0
    %v1230 = vadd.f32 0.0, %v1229
    %1231 = vmatmul.f32.gmra.mxu0 %v980
    %v1232 = vpop.f32.mrf.mxu0
    %v1233 = vadd.f32 0.0, %v1232
    %1234 = vmatmul.f32.gmra.mxu0 %v981
    %v1235 = vpop.f32.mrf.mxu0
    %v1236 = vadd.f32 0.0, %v1235
    %1237 = vmatmul.f32.gmra.mxu0 %v982
    %v1238 = vpop.f32.mrf.mxu0
    %v1239 = vadd.f32 0.0, %v1238
    %1240 = vmatmul.f32.gmra.mxu0 %v983
    %v1241 = vpop.f32.mrf.mxu0
    %v1242 = vadd.f32 0.0, %v1241
    %1243 = vmatmul.f32.gmra.mxu0 %v984
    %v1244 = vpop.f32.mrf.mxu0
    %v1245 = vadd.f32 0.0, %v1244
    %1246 = vmatmul.f32.gmra.mxu0 %v985
    %v1247 = vpop.f32.mrf.mxu0
    %v1248 = vadd.f32 0.0, %v1247
    %1249 = vmatmul.f32.gmra.mxu0 %v986
    %v1250 = vpop.f32.mrf.mxu0
    %v1251 = vadd.f32 0.0, %v1250
    %1252 = vmatmul.f32.gmra.mxu0 %v987
    %v1253 = vpop.f32.mrf.mxu0
    %v1254 = vadd.f32 0.0, %v1253
    %1255 = vmatmul.f32.gmra.mxu0 %v988
    %v1256 = vpop.f32.mrf.mxu0
    %v1257 = vadd.f32 0.0, %v1256
    %1258 = vmatmul.f32.gmra.mxu0 %v989
    %v1259 = vpop.f32.mrf.mxu0
    %v1260 = vadd.f32 0.0, %v1259
    %1261 = vmatmul.f32.gmra.mxu0 %v990
    %v1262 = vpop.f32.mrf.mxu0
    %v1263 = vadd.f32 0.0, %v1262
    %1264 = vmatmul.f32.gmra.mxu0 %v991
    %v1265 = vpop.f32.mrf.mxu0
    %v1266 = vadd.f32 0.0, %v1265
    %1267 = vmatmul.f32.gmra.mxu0 %v992
    %v1268 = vpop.f32.mrf.mxu0
    %v1269 = vadd.f32 0.0, %v1268
    %1270 = vmatmul.f32.gmra.mxu0 %v993
    %v1271 = vpop.f32.mrf.mxu0
    %v1272 = vadd.f32 0.0, %v1271
    %1273 = vmatmul.f32.gmra.mxu0 %v994
    %v1274 = vpop.f32.mrf.mxu0
    %v1275 = vadd.f32 0.0, %v1274
    %1276 = vmatmul.f32.gmra.mxu0 %v995
    %v1277 = vpop.f32.mrf.mxu0
    %v1278 = vadd.f32 0.0, %v1277
    %1279 = vmatmul.f32.gmra.mxu0 %v996
    %v1280 = vpop.f32.mrf.mxu0
    %v1281 = vadd.f32 0.0, %v1280
    %1282 = vmatmul.f32.gmra.mxu0 %v997
    %v1283 = vpop.f32.mrf.mxu0
    %v1284 = vadd.f32 0.0, %v1283
    %1285 = vmatmul.f32.gmra.mxu0 %v998
    %v1286 = vpop.f32.mrf.mxu0
    %v1287 = vadd.f32 0.0, %v1286
    %1288 = vmatmul.f32.gmra.mxu0 %v999
    %v1289 = vpop.f32.mrf.mxu0
    %v1290 = vadd.f32 0.0, %v1289
    %1291 = vmatmul.f32.gmra.mxu0 %v1000
    %v1292 = vpop.f32.mrf.mxu0
    %v1293 = vadd.f32 0.0, %v1292
    %1294 = vmatmul.f32.gmra.mxu0 %v1001
    %v1295 = vpop.f32.mrf.mxu0
    %v1296 = vadd.f32 0.0, %v1295
    %1297 = vmatmul.f32.gmra.mxu0 %v1002
    %v1298 = vpop.f32.mrf.mxu0
    %v1299 = vadd.f32 0.0, %v1298
    %1300 = vmatmul.f32.gmra.mxu0 %v1003
    %v1301 = vpop.f32.mrf.mxu0
    %v1302 = vadd.f32 0.0, %v1301
    %1303 = vmatmul.f32.gmra.mxu0 %v1004
    %v1304 = vpop.f32.mrf.mxu0
    %v1305 = vadd.f32 0.0, %v1304
    %1306 = vmatmul.f32.gmra.mxu0 %v1005
    %v1307 = vpop.f32.mrf.mxu0
    %v1308 = vadd.f32 0.0, %v1307
    %1309 = vmatmul.f32.gmra.mxu0 %v1006
    %v1310 = vpop.f32.mrf.mxu0
    %v1311 = vadd.f32 0.0, %v1310
    %1312 = vmatmul.f32.gmra.mxu0 %v1007
    %v1313 = vpop.f32.mrf.mxu0
    %v1314 = vadd.f32 0.0, %v1313
    %1315 = vmatmul.f32.gmra.mxu0 %v1008
    %v1316 = vpop.f32.mrf.mxu0
    %v1317 = vadd.f32 0.0, %v1316
    %1318 = vmatmul.f32.gmra.mxu0 %v1009
    %v1319 = vpop.f32.mrf.mxu0
    %v1320 = vadd.f32 0.0, %v1319
    %1321 = vmatmul.f32.gmra.mxu0 %v1010
    %v1322 = vpop.f32.mrf.mxu0
    %v1323 = vadd.f32 0.0, %v1322
    %1324 = vmatmul.f32.gmra.mxu0 %v1011
    %v1325 = vpop.f32.mrf.mxu0
    %v1326 = vadd.f32 0.0, %v1325
    %1327 = vmatmul.f32.gmra.mxu0 %v1012
    %v1328 = vpop.f32.mrf.mxu0
    %v1329 = vadd.f32 0.0, %v1328
    %1330 = vmatmul.f32.gmra.mxu0 %v1013
    %v1331 = vpop.f32.mrf.mxu0
    %v1332 = vadd.f32 0.0, %v1331
    %1333 = vmatmul.f32.gmra.mxu0 %v1014
    %v1334 = vpop.f32.mrf.mxu0
    %v1335 = vadd.f32 0.0, %v1334
    %1336 = vmatmul.f32.gmra.mxu0 %v1015
    %v1337 = vpop.f32.mrf.mxu0
    %v1338 = vadd.f32 0.0, %v1337
    %1339 = vmatmul.f32.gmra.mxu0 %v1016
    %v1340 = vpop.f32.mrf.mxu0
    %v1341 = vadd.f32 0.0, %v1340
    %1342 = vmatmul.f32.gmra.mxu0 %v1017
    %v1343 = vpop.f32.mrf.mxu0
    %v1344 = vadd.f32 0.0, %v1343
    %1345 = vmatmul.f32.gmra.mxu0 %v1018
    %v1346 = vpop.f32.mrf.mxu0
    %v1347 = vadd.f32 0.0, %v1346
    %1348 = vmatmul.f32.gmra.mxu0 %v1019
    %v1349 = vpop.f32.mrf.mxu0
    %v1350 = vadd.f32 0.0, %v1349
    %1351 = vmatmul.f32.gmra.mxu0 %v1020
    %v1352 = vpop.f32.mrf.mxu0
    %v1353 = vadd.f32 0.0, %v1352
    %1354 = vmatmul.f32.gmra.mxu0 %v1021
    %v1355 = vpop.f32.mrf.mxu0
    %v1356 = vadd.f32 0.0, %v1355
    %1357 = vmatmul.f32.gmra.mxu0 %v1022
    %v1358 = vpop.f32.mrf.mxu0
    %v1359 = vadd.f32 0.0, %v1358
    %1360 = vmatmul.f32.gmra.mxu0 %v1023
    %v1361 = vpop.f32.mrf.mxu0
    %v1362 = vadd.f32 0.0, %v1361
    %1363 = vmatmul.f32.gmra.mxu0 %v1024
    %v1364 = vpop.f32.mrf.mxu0
    %v1365 = vadd.f32 0.0, %v1364
    %1366 = vmatmul.f32.gmra.mxu0 %v1025
    %v1367 = vpop.f32.mrf.mxu0
    %v1368 = vadd.f32 0.0, %v1367
    %1369 = vmatmul.f32.gmra.mxu0 %v1026
    %v1370 = vpop.f32.mrf.mxu0
    %v1371 = vadd.f32 0.0, %v1370
    %1372 = vmatmul.f32.gmra.mxu0 %v1027
    %v1373 = vpop.f32.mrf.mxu0
    %v1374 = vadd.f32 0.0, %v1373
    %1375 = vmatmul.f32.gmra.mxu0 %v1028
    %v1376 = vpop.f32.mrf.mxu0
    %v1377 = vadd.f32 0.0, %v1376
    %1378 = vmatmul.f32.gmra.mxu0 %v1029
    %v1379 = vpop.f32.mrf.mxu0
    %v1380 = vadd.f32 0.0, %v1379
    %1381 = vmatmul.f32.gmra.mxu0 %v1030
    %v1382 = vpop.f32.mrf.mxu0
    %v1383 = vadd.f32 0.0, %v1382
    %1384 = vmatmul.f32.gmra.mxu0 %v1031
    %v1385 = vpop.f32.mrf.mxu0
    %v1386 = vadd.f32 0.0, %v1385
    %1387 = vmatmul.f32.gmra.mxu0 %v1032
    %v1388 = vpop.f32.mrf.mxu0
    %v1389 = vadd.f32 0.0, %v1388
    %1390 = vmatmul.f32.gmra.mxu0 %v1033
    %v1391 = vpop.f32.mrf.mxu0
    %v1392 = vadd.f32 0.0, %v1391
    %1393 = vmatmul.f32.gmra.mxu0 %v1034
    %v1394 = vpop.f32.mrf.mxu0
    %v1395 = vadd.f32 0.0, %v1394
    %1396 = vmatmul.f32.gmra.mxu0 %v1035
    %v1397 = vpop.f32.mrf.mxu0
    %v1398 = vadd.f32 0.0, %v1397
    %1399 = vmatmul.f32.gmra.mxu0 %v1036
    %v1400 = vpop.f32.mrf.mxu0
    %v1401 = vadd.f32 0.0, %v1400
    %1402 = vmatmul.f32.gmra.mxu0 %v1037
    %v1403 = vpop.f32.mrf.mxu0
    %v1404 = vadd.f32 0.0, %v1403
    %1405 = vmatmul.f32.gmra.mxu0 %v1038
    %v1406 = vpop.f32.mrf.mxu0
    %v1407 = vadd.f32 0.0, %v1406
    %1408 = vmatmul.f32.gmra.mxu0 %v1039
    %v1409 = vpop.f32.mrf.mxu0
    %v1410 = vadd.f32 0.0, %v1409
    %1411 = vmatmul.f32.gmra.mxu0 %v1040
    %v1412 = vpop.f32.mrf.mxu0
    %v1413 = vadd.f32 0.0, %v1412
    %1414 = vmatmul.f32.gmra.mxu0 %v1041
    %v1415 = vpop.f32.mrf.mxu0
    %v1416 = vadd.f32 0.0, %v1415
    %1417 = vmatmul.f32.gmra.mxu0 %v1042
    %v1418 = vpop.f32.mrf.mxu0
    %v1419 = vadd.f32 0.0, %v1418
    %1420 = vmatmul.f32.gmra.mxu0 %v1043
    %v1421 = vpop.f32.mrf.mxu0
    %v1422 = vadd.f32 0.0, %v1421
    %1423 = vmatmul.f32.gmra.mxu0 %v1044
    %v1424 = vpop.f32.mrf.mxu0
    %v1425 = vadd.f32 0.0, %v1424
    %1426 = vmatmul.f32.gmra.mxu0 %v1045
    %v1427 = vpop.f32.mrf.mxu0
    %v1428 = vadd.f32 0.0, %v1427
    %1429 = vmatmul.f32.gmra.mxu0 %v1046
    %v1430 = vpop.f32.mrf.mxu0
    %v1431 = vadd.f32 0.0, %v1430
    %1432 = vmatmul.f32.gmra.mxu0 %v1047
    %v1433 = vpop.f32.mrf.mxu0
    %v1434 = vadd.f32 0.0, %v1433
    %1435 = vmatmul.f32.gmra.mxu0 %v1048
    %v1436 = vpop.f32.mrf.mxu0
    %v1437 = vadd.f32 0.0, %v1436
    %1438 = vmatmul.f32.gmra.mxu0 %v1049
    %v1439 = vpop.f32.mrf.mxu0
    %v1440 = vadd.f32 0.0, %v1439
    %1441 = vmatmul.f32.gmra.mxu0 %v1050
    %v1442 = vpop.f32.mrf.mxu0
    %v1443 = vadd.f32 0.0, %v1442
    %1444 = vmatmul.f32.gmra.mxu0 %v1051
    %v1445 = vpop.f32.mrf.mxu0
    %v1446 = vadd.f32 0.0, %v1445
    %1447 = vmatmul.f32.gmra.mxu0 %v1052
    %v1448 = vpop.f32.mrf.mxu0
    %v1449 = vadd.f32 0.0, %v1448
    %1450 = vmatmul.f32.gmra.mxu0 %v1053
    %v1451 = vpop.f32.mrf.mxu0
    %v1452 = vadd.f32 0.0, %v1451
    %1453 = vmatmul.f32.gmra.mxu0 %v1054
    %v1454 = vpop.f32.mrf.mxu0
    %v1455 = vadd.f32 0.0, %v1454
    %1456 = vmatmul.f32.gmra.mxu0 %v1055
    %v1457 = vpop.f32.mrf.mxu0
    %v1458 = vadd.f32 0.0, %v1457
    %1459 = vmatmul.f32.gmra.mxu0 %v1056
    %v1460 = vpop.f32.mrf.mxu0
    %v1461 = vadd.f32 0.0, %v1460
    %1462 = vmatmul.f32.gmra.mxu0 %v1057
    %v1463 = vpop.f32.mrf.mxu0
    %v1464 = vadd.f32 0.0, %v1463
    %1465 = vmatmul.f32.gmra.mxu0 %v1058
    %v1466 = vpop.f32.mrf.mxu0
    %v1467 = vadd.f32 0.0, %v1466
    %1468 = vmatmul.f32.gmra.mxu0 %v1059
    %v1469 = vpop.f32.mrf.mxu0
    %v1470 = vadd.f32 0.0, %v1469
    %1471 = vmatmul.f32.gmra.mxu0 %v1060
    %v1472 = vpop.f32.mrf.mxu0
    %v1473 = vadd.f32 0.0, %v1472
    %1474 = vmatmul.f32.gmra.mxu0 %v1061
    %v1475 = vpop.f32.mrf.mxu0
    %v1476 = vadd.f32 0.0, %v1475
    %1477 = vmatmul.f32.gmra.mxu0 %v1062
    %v1478 = vpop.f32.mrf.mxu0
    %v1479 = vadd.f32 0.0, %v1478
    %1480 = vmatmul.f32.gmra.mxu0 %v1063
    %v1481 = vpop.f32.mrf.mxu0
    %v1482 = vadd.f32 0.0, %v1481
    %1483 = vmatmul.f32.gmra.mxu0 %v1064
    %v1484 = vpop.f32.mrf.mxu0
    %v1485 = vadd.f32 0.0, %v1484
    %1486 = vmatmul.f32.gmra.mxu0 %v1065
    %v1487 = vpop.f32.mrf.mxu0
    %v1488 = vadd.f32 0.0, %v1487
    %1489 = vmatmul.f32.gmra.mxu0 %v1066
    %v1490 = vpop.f32.mrf.mxu0
    %v1491 = vadd.f32 0.0, %v1490
    %1492 = vmatmul.f32.gmra.mxu0 %v1067
    %v1493 = vpop.f32.mrf.mxu0
    %v1494 = vadd.f32 0.0, %v1493
    %1495 = vmatmul.f32.gmra.mxu0 %v1068
    %v1496 = vpop.f32.mrf.mxu0
    %v1497 = vadd.f32 0.0, %v1496
    %1498 = vmatmul.f32.gmra.mxu0 %v1069
    %v1499 = vpop.f32.mrf.mxu0
    %v1500 = vadd.f32 0.0, %v1499
    %1501 = vmatmul.f32.gmra.mxu0 %v1070
    %v1502 = vpop.f32.mrf.mxu0
    %v1503 = vadd.f32 0.0, %v1502
    %1504 = vmatmul.f32.gmra.mxu0 %v1071
    %v1505 = vpop.f32.mrf.mxu0
    %v1506 = vadd.f32 0.0, %v1505
    %1507 = vmatmul.f32.gmra.mxu0 %v1072
    %v1508 = vpop.f32.mrf.mxu0
    %v1509 = vadd.f32 0.0, %v1508
    %1510 = vmatmul.f32.gmra.mxu0 %v1073
    %v1511 = vpop.f32.mrf.mxu0
    %v1512 = vadd.f32 0.0, %v1511
    %1513 = vmatmul.f32.gmra.mxu0 %v1074
    %v1514 = vpop.f32.mrf.mxu0
    %v1515 = vadd.f32 0.0, %v1514
    %1516 = vmatmul.f32.gmra.mxu0 %v1075
    %v1517 = vpop.f32.mrf.mxu0
    %v1518 = vadd.f32 0.0, %v1517
    %1519 = vmatmul.f32.gmra.mxu0 %v1076
    %v1520 = vpop.f32.mrf.mxu0
    %v1521 = vadd.f32 0.0, %v1520
    %1522 = vmatmul.f32.gmra.mxu0 %v1077
    %v1523 = vpop.f32.mrf.mxu0
    %v1524 = vadd.f32 0.0, %v1523
    %1525 = vmatmul.f32.gmra.mxu0 %v1078
    %v1526 = vpop.f32.mrf.mxu0
    %v1527 = vadd.f32 0.0, %v1526
    %1528 = vmatmul.f32.gmra.mxu0 %v1079
    %v1529 = vpop.f32.mrf.mxu0
    %v1530 = vadd.f32 0.0, %v1529
    %1531 = vdwg.mxu0
    %1533 = vset.pattern.permute.xlu0 0
    %1534 = vperm.xlu0 %1533, %v1149
    %v1535 = vpop.permute.xlu0 %1534
    %1538 = vset.pattern.permute.xlu0 0
    %1539 = vperm.xlu0 %1538, %v1152
    %v1540 = vpop.permute.xlu0 %1539
    %1543 = vset.pattern.permute.xlu0 0
    %1544 = vperm.xlu0 %1543, %v1155
    %v1545 = vpop.permute.xlu0 %1544
    %1548 = vset.pattern.permute.xlu0 0
    %1549 = vperm.xlu0 %1548, %v1158
    %v1550 = vpop.permute.xlu0 %1549
    %1553 = vset.pattern.permute.xlu0 0
    %1554 = vperm.xlu0 %1553, %v1161
    %v1555 = vpop.permute.xlu0 %1554
    %1558 = vset.pattern.permute.xlu0 0
    %1559 = vperm.xlu0 %1558, %v1164
    %v1560 = vpop.permute.xlu0 %1559
    %1563 = vset.pattern.permute.xlu0 0
    %1564 = vperm.xlu0 %1563, %v1167
    %v1565 = vpop.permute.xlu0 %1564
    %1568 = vset.pattern.permute.xlu0 0
    %1569 = vperm.xlu0 %1568, %v1170
    %v1570 = vpop.permute.xlu0 %1569
    %1573 = vset.pattern.permute.xlu0 0
    %1574 = vperm.xlu0 %1573, %v1173
    %v1575 = vpop.permute.xlu0 %1574
    %1578 = vset.pattern.permute.xlu0 0
    %1579 = vperm.xlu0 %1578, %v1176
    %v1580 = vpop.permute.xlu0 %1579
    %1583 = vset.pattern.permute.xlu0 0
    %1584 = vperm.xlu0 %1583, %v1179
    %v1585 = vpop.permute.xlu0 %1584
    %1588 = vset.pattern.permute.xlu0 0
    %1589 = vperm.xlu0 %1588, %v1182
    %v1590 = vpop.permute.xlu0 %1589
    %1593 = vset.pattern.permute.xlu0 0
    %1594 = vperm.xlu0 %1593, %v1185
    %v1595 = vpop.permute.xlu0 %1594
    %1598 = vset.pattern.permute.xlu0 0
    %1599 = vperm.xlu0 %1598, %v1188
    %v1600 = vpop.permute.xlu0 %1599
    %1603 = vset.pattern.permute.xlu0 0
    %1604 = vperm.xlu0 %1603, %v1191
    %v1605 = vpop.permute.xlu0 %1604
    %1608 = vset.pattern.permute.xlu0 0
    %1609 = vperm.xlu0 %1608, %v1194
    %v1610 = vpop.permute.xlu0 %1609
    %1613 = vset.pattern.permute.xlu0 0
    %1614 = vperm.xlu0 %1613, %v1197
    %v1615 = vpop.permute.xlu0 %1614
    %1618 = vset.pattern.permute.xlu0 0
    %1619 = vperm.xlu0 %1618, %v1200
    %v1620 = vpop.permute.xlu0 %1619
    %1623 = vset.pattern.permute.xlu0 0
    %1624 = vperm.xlu0 %1623, %v1203
    %v1625 = vpop.permute.xlu0 %1624
    %1628 = vset.pattern.permute.xlu0 0
    %1629 = vperm.xlu0 %1628, %v1206
    %v1630 = vpop.permute.xlu0 %1629
    %1633 = vset.pattern.permute.xlu0 0
    %1634 = vperm.xlu0 %1633, %v1209
    %v1635 = vpop.permute.xlu0 %1634
    %1638 = vset.pattern.permute.xlu0 0
    %1639 = vperm.xlu0 %1638, %v1212
    %v1640 = vpop.permute.xlu0 %1639
    %1643 = vset.pattern.permute.xlu0 0
    %1644 = vperm.xlu0 %1643, %v1215
    %v1645 = vpop.permute.xlu0 %1644
    %1648 = vset.pattern.permute.xlu0 0
    %1649 = vperm.xlu0 %1648, %v1218
    %v1650 = vpop.permute.xlu0 %1649
    %1653 = vset.pattern.permute.xlu0 0
    %1654 = vperm.xlu0 %1653, %v1221
    %v1655 = vpop.permute.xlu0 %1654
    %1658 = vset.pattern.permute.xlu0 0
    %1659 = vperm.xlu0 %1658, %v1224
    %v1660 = vpop.permute.xlu0 %1659
    %1663 = vset.pattern.permute.xlu0 0
    %1664 = vperm.xlu0 %1663, %v1227
    %v1665 = vpop.permute.xlu0 %1664
    %1668 = vset.pattern.permute.xlu0 0
    %1669 = vperm.xlu0 %1668, %v1230
    %v1670 = vpop.permute.xlu0 %1669
    %1673 = vset.pattern.permute.xlu0 0
    %1674 = vperm.xlu0 %1673, %v1233
    %v1675 = vpop.permute.xlu0 %1674
    %1678 = vset.pattern.permute.xlu0 0
    %1679 = vperm.xlu0 %1678, %v1236
    %v1680 = vpop.permute.xlu0 %1679
    %1683 = vset.pattern.permute.xlu0 0
    %1684 = vperm.xlu0 %1683, %v1239
    %v1685 = vpop.permute.xlu0 %1684
    %1688 = vset.pattern.permute.xlu0 0
    %1689 = vperm.xlu0 %1688, %v1242
    %v1690 = vpop.permute.xlu0 %1689
    %1693 = vset.pattern.permute.xlu0 0
    %1694 = vperm.xlu0 %1693, %v1245
    %v1695 = vpop.permute.xlu0 %1694
    %1698 = vset.pattern.permute.xlu0 0
    %1699 = vperm.xlu0 %1698, %v1248
    %v1700 = vpop.permute.xlu0 %1699
    %1703 = vset.pattern.permute.xlu0 0
    %1704 = vperm.xlu0 %1703, %v1251
    %v1705 = vpop.permute.xlu0 %1704
    %1708 = vset.pattern.permute.xlu0 0
    %1709 = vperm.xlu0 %1708, %v1254
    %v1710 = vpop.permute.xlu0 %1709
    %1713 = vset.pattern.permute.xlu0 0
    %1714 = vperm.xlu0 %1713, %v1257
    %v1715 = vpop.permute.xlu0 %1714
    %1718 = vset.pattern.permute.xlu0 0
    %1719 = vperm.xlu0 %1718, %v1260
    %v1720 = vpop.permute.xlu0 %1719
    %1723 = vset.pattern.permute.xlu0 0
    %1724 = vperm.xlu0 %1723, %v1263
    %v1725 = vpop.permute.xlu0 %1724
    %1728 = vset.pattern.permute.xlu0 0
    %1729 = vperm.xlu0 %1728, %v1266
    %v1730 = vpop.permute.xlu0 %1729
    %1733 = vset.pattern.permute.xlu0 0
    %1734 = vperm.xlu0 %1733, %v1269
    %v1735 = vpop.permute.xlu0 %1734
    %1738 = vset.pattern.permute.xlu0 0
    %1739 = vperm.xlu0 %1738, %v1272
    %v1740 = vpop.permute.xlu0 %1739
    %1743 = vset.pattern.permute.xlu0 0
    %1744 = vperm.xlu0 %1743, %v1275
    %v1745 = vpop.permute.xlu0 %1744
    %1748 = vset.pattern.permute.xlu0 0
    %1749 = vperm.xlu0 %1748, %v1278
    %v1750 = vpop.permute.xlu0 %1749
    %1753 = vset.pattern.permute.xlu0 0
    %1754 = vperm.xlu0 %1753, %v1281
    %v1755 = vpop.permute.xlu0 %1754
    %1758 = vset.pattern.permute.xlu0 0
    %1759 = vperm.xlu0 %1758, %v1284
    %v1760 = vpop.permute.xlu0 %1759
    %1763 = vset.pattern.permute.xlu0 0
    %1764 = vperm.xlu0 %1763, %v1287
    %v1765 = vpop.permute.xlu0 %1764
    %1768 = vset.pattern.permute.xlu0 0
    %1769 = vperm.xlu0 %1768, %v1290
    %v1770 = vpop.permute.xlu0 %1769
    %1773 = vset.pattern.permute.xlu0 0
    %1774 = vperm.xlu0 %1773, %v1293
    %v1775 = vpop.permute.xlu0 %1774
    %1778 = vset.pattern.permute.xlu0 0
    %1779 = vperm.xlu0 %1778, %v1296
    %v1780 = vpop.permute.xlu0 %1779
    %1783 = vset.pattern.permute.xlu0 0
    %1784 = vperm.xlu0 %1783, %v1299
    %v1785 = vpop.permute.xlu0 %1784
    %1788 = vset.pattern.permute.xlu0 0
    %1789 = vperm.xlu0 %1788, %v1302
    %v1790 = vpop.permute.xlu0 %1789
    %1793 = vset.pattern.permute.xlu0 0
    %1794 = vperm.xlu0 %1793, %v1305
    %v1795 = vpop.permute.xlu0 %1794
    %1798 = vset.pattern.permute.xlu0 0
    %1799 = vperm.xlu0 %1798, %v1308
    %v1800 = vpop.permute.xlu0 %1799
    %1803 = vset.pattern.permute.xlu0 0
    %1804 = vperm.xlu0 %1803, %v1311
    %v1805 = vpop.permute.xlu0 %1804
    %1808 = vset.pattern.permute.xlu0 0
    %1809 = vperm.xlu0 %1808, %v1314
    %v1810 = vpop.permute.xlu0 %1809
    %1813 = vset.pattern.permute.xlu0 0
    %1814 = vperm.xlu0 %1813, %v1317
    %v1815 = vpop.permute.xlu0 %1814
    %1818 = vset.pattern.permute.xlu0 0
    %1819 = vperm.xlu0 %1818, %v1320
    %v1820 = vpop.permute.xlu0 %1819
    %1823 = vset.pattern.permute.xlu0 0
    %1824 = vperm.xlu0 %1823, %v1323
    %v1825 = vpop.permute.xlu0 %1824
    %1828 = vset.pattern.permute.xlu0 0
    %1829 = vperm.xlu0 %1828, %v1326
    %v1830 = vpop.permute.xlu0 %1829
    %1833 = vset.pattern.permute.xlu0 0
    %1834 = vperm.xlu0 %1833, %v1329
    %v1835 = vpop.permute.xlu0 %1834
    %1838 = vset.pattern.permute.xlu0 0
    %1839 = vperm.xlu0 %1838, %v1332
    %v1840 = vpop.permute.xlu0 %1839
    %1843 = vset.pattern.permute.xlu0 0
    %1844 = vperm.xlu0 %1843, %v1335
    %v1845 = vpop.permute.xlu0 %1844
    %1848 = vset.pattern.permute.xlu0 0
    %1849 = vperm.xlu0 %1848, %v1338
    %v1850 = vpop.permute.xlu0 %1849
    %1853 = vset.pattern.permute.xlu0 0
    %1854 = vperm.xlu0 %1853, %v1341
    %v1855 = vpop.permute.xlu0 %1854
    %1858 = vset.pattern.permute.xlu0 0
    %1859 = vperm.xlu0 %1858, %v1344
    %v1860 = vpop.permute.xlu0 %1859
    %1863 = vset.pattern.permute.xlu0 0
    %1864 = vperm.xlu0 %1863, %v1347
    %v1865 = vpop.permute.xlu0 %1864
    %1868 = vset.pattern.permute.xlu0 0
    %1869 = vperm.xlu0 %1868, %v1350
    %v1870 = vpop.permute.xlu0 %1869
    %1873 = vset.pattern.permute.xlu0 0
    %1874 = vperm.xlu0 %1873, %v1353
    %v1875 = vpop.permute.xlu0 %1874
    %1878 = vset.pattern.permute.xlu0 0
    %1879 = vperm.xlu0 %1878, %v1356
    %v1880 = vpop.permute.xlu0 %1879
    %1883 = vset.pattern.permute.xlu0 0
    %1884 = vperm.xlu0 %1883, %v1359
    %v1885 = vpop.permute.xlu0 %1884
    %1888 = vset.pattern.permute.xlu0 0
    %1889 = vperm.xlu0 %1888, %v1362
    %v1890 = vpop.permute.xlu0 %1889
    %1893 = vset.pattern.permute.xlu0 0
    %1894 = vperm.xlu0 %1893, %v1365
    %v1895 = vpop.permute.xlu0 %1894
    %1898 = vset.pattern.permute.xlu0 0
    %1899 = vperm.xlu0 %1898, %v1368
    %v1900 = vpop.permute.xlu0 %1899
    %1903 = vset.pattern.permute.xlu0 0
    %1904 = vperm.xlu0 %1903, %v1371
    %v1905 = vpop.permute.xlu0 %1904
    %1908 = vset.pattern.permute.xlu0 0
    %1909 = vperm.xlu0 %1908, %v1374
    %v1910 = vpop.permute.xlu0 %1909
    %1913 = vset.pattern.permute.xlu0 0
    %1914 = vperm.xlu0 %1913, %v1377
    %v1915 = vpop.permute.xlu0 %1914
    %1918 = vset.pattern.permute.xlu0 0
    %1919 = vperm.xlu0 %1918, %v1380
    %v1920 = vpop.permute.xlu0 %1919
    %1923 = vset.pattern.permute.xlu0 0
    %1924 = vperm.xlu0 %1923, %v1383
    %v1925 = vpop.permute.xlu0 %1924
    %1928 = vset.pattern.permute.xlu0 0
    %1929 = vperm.xlu0 %1928, %v1386
    %v1930 = vpop.permute.xlu0 %1929
    %1933 = vset.pattern.permute.xlu0 0
    %1934 = vperm.xlu0 %1933, %v1389
    %v1935 = vpop.permute.xlu0 %1934
    %1938 = vset.pattern.permute.xlu0 0
    %1939 = vperm.xlu0 %1938, %v1392
    %v1940 = vpop.permute.xlu0 %1939
    %1943 = vset.pattern.permute.xlu0 0
    %1944 = vperm.xlu0 %1943, %v1395
    %v1945 = vpop.permute.xlu0 %1944
    %1948 = vset.pattern.permute.xlu0 0
    %1949 = vperm.xlu0 %1948, %v1398
    %v1950 = vpop.permute.xlu0 %1949
    %1953 = vset.pattern.permute.xlu0 0
    %1954 = vperm.xlu0 %1953, %v1401
    %v1955 = vpop.permute.xlu0 %1954
    %1958 = vset.pattern.permute.xlu0 0
    %1959 = vperm.xlu0 %1958, %v1404
    %v1960 = vpop.permute.xlu0 %1959
    %1963 = vset.pattern.permute.xlu0 0
    %1964 = vperm.xlu0 %1963, %v1407
    %v1965 = vpop.permute.xlu0 %1964
    %1968 = vset.pattern.permute.xlu0 0
    %1969 = vperm.xlu0 %1968, %v1410
    %v1970 = vpop.permute.xlu0 %1969
    %1973 = vset.pattern.permute.xlu0 0
    %1974 = vperm.xlu0 %1973, %v1413
    %v1975 = vpop.permute.xlu0 %1974
    %1978 = vset.pattern.permute.xlu0 0
    %1979 = vperm.xlu0 %1978, %v1416
    %v1980 = vpop.permute.xlu0 %1979
    %1983 = vset.pattern.permute.xlu0 0
    %1984 = vperm.xlu0 %1983, %v1419
    %v1985 = vpop.permute.xlu0 %1984
    %1988 = vset.pattern.permute.xlu0 0
    %1989 = vperm.xlu0 %1988, %v1422
    %v1990 = vpop.permute.xlu0 %1989
    %1993 = vset.pattern.permute.xlu0 0
    %1994 = vperm.xlu0 %1993, %v1425
    %v1995 = vpop.permute.xlu0 %1994
    %1998 = vset.pattern.permute.xlu0 0
    %1999 = vperm.xlu0 %1998, %v1428
    %v2000 = vpop.permute.xlu0 %1999
    %2003 = vset.pattern.permute.xlu0 0
    %2004 = vperm.xlu0 %2003, %v1431
    %v2005 = vpop.permute.xlu0 %2004
    %2008 = vset.pattern.permute.xlu0 0
    %2009 = vperm.xlu0 %2008, %v1434
    %v2010 = vpop.permute.xlu0 %2009
    %2013 = vset.pattern.permute.xlu0 0
    %2014 = vperm.xlu0 %2013, %v1437
    %v2015 = vpop.permute.xlu0 %2014
    %2018 = vset.pattern.permute.xlu0 0
    %2019 = vperm.xlu0 %2018, %v1440
    %v2020 = vpop.permute.xlu0 %2019
    %2023 = vset.pattern.permute.xlu0 0
    %2024 = vperm.xlu0 %2023, %v1443
    %v2025 = vpop.permute.xlu0 %2024
    %2028 = vset.pattern.permute.xlu0 0
    %2029 = vperm.xlu0 %2028, %v1446
    %v2030 = vpop.permute.xlu0 %2029
    %2033 = vset.pattern.permute.xlu0 0
    %2034 = vperm.xlu0 %2033, %v1449
    %v2035 = vpop.permute.xlu0 %2034
    %2038 = vset.pattern.permute.xlu0 0
    %2039 = vperm.xlu0 %2038, %v1452
    %v2040 = vpop.permute.xlu0 %2039
    %2043 = vset.pattern.permute.xlu0 0
    %2044 = vperm.xlu0 %2043, %v1455
    %v2045 = vpop.permute.xlu0 %2044
    %2048 = vset.pattern.permute.xlu0 0
    %2049 = vperm.xlu0 %2048, %v1458
    %v2050 = vpop.permute.xlu0 %2049
    %2053 = vset.pattern.permute.xlu0 0
    %2054 = vperm.xlu0 %2053, %v1461
    %v2055 = vpop.permute.xlu0 %2054
    %2058 = vset.pattern.permute.xlu0 0
    %2059 = vperm.xlu0 %2058, %v1464
    %v2060 = vpop.permute.xlu0 %2059
    %2063 = vset.pattern.permute.xlu0 0
    %2064 = vperm.xlu0 %2063, %v1467
    %v2065 = vpop.permute.xlu0 %2064
    %2068 = vset.pattern.permute.xlu0 0
    %2069 = vperm.xlu0 %2068, %v1470
    %v2070 = vpop.permute.xlu0 %2069
    %2073 = vset.pattern.permute.xlu0 0
    %2074 = vperm.xlu0 %2073, %v1473
    %v2075 = vpop.permute.xlu0 %2074
    %2078 = vset.pattern.permute.xlu0 0
    %2079 = vperm.xlu0 %2078, %v1476
    %v2080 = vpop.permute.xlu0 %2079
    %2083 = vset.pattern.permute.xlu0 0
    %2084 = vperm.xlu0 %2083, %v1479
    %v2085 = vpop.permute.xlu0 %2084
    %2088 = vset.pattern.permute.xlu0 0
    %2089 = vperm.xlu0 %2088, %v1482
    %v2090 = vpop.permute.xlu0 %2089
    %2093 = vset.pattern.permute.xlu0 0
    %2094 = vperm.xlu0 %2093, %v1485
    %v2095 = vpop.permute.xlu0 %2094
    %2098 = vset.pattern.permute.xlu0 0
    %2099 = vperm.xlu0 %2098, %v1488
    %v2100 = vpop.permute.xlu0 %2099
    %2103 = vset.pattern.permute.xlu0 0
    %2104 = vperm.xlu0 %2103, %v1491
    %v2105 = vpop.permute.xlu0 %2104
    %2108 = vset.pattern.permute.xlu0 0
    %2109 = vperm.xlu0 %2108, %v1494
    %v2110 = vpop.permute.xlu0 %2109
    %2113 = vset.pattern.permute.xlu0 0
    %2114 = vperm.xlu0 %2113, %v1497
    %v2115 = vpop.permute.xlu0 %2114
    %2118 = vset.pattern.permute.xlu0 0
    %2119 = vperm.xlu0 %2118, %v1500
    %v2120 = vpop.permute.xlu0 %2119
    %2123 = vset.pattern.permute.xlu0 0
    %2124 = vperm.xlu0 %2123, %v1503
    %v2125 = vpop.permute.xlu0 %2124
    %2128 = vset.pattern.permute.xlu0 0
    %2129 = vperm.xlu0 %2128, %v1506
    %v2130 = vpop.permute.xlu0 %2129
    %2133 = vset.pattern.permute.xlu0 0
    %2134 = vperm.xlu0 %2133, %v1509
    %v2135 = vpop.permute.xlu0 %2134
    %2138 = vset.pattern.permute.xlu0 0
    %2139 = vperm.xlu0 %2138, %v1512
    %v2140 = vpop.permute.xlu0 %2139
    %2143 = vset.pattern.permute.xlu0 0
    %2144 = vperm.xlu0 %2143, %v1515
    %v2145 = vpop.permute.xlu0 %2144
    %2148 = vset.pattern.permute.xlu0 0
    %2149 = vperm.xlu0 %2148, %v1518
    %v2150 = vpop.permute.xlu0 %2149
    %2153 = vset.pattern.permute.xlu0 0
    %2154 = vperm.xlu0 %2153, %v1521
    %v2155 = vpop.permute.xlu0 %2154
    %2158 = vset.pattern.permute.xlu0 0
    %2159 = vperm.xlu0 %2158, %v1524
    %v2160 = vpop.permute.xlu0 %2159
    %2163 = vset.pattern.permute.xlu0 0
    %2164 = vperm.xlu0 %2163, %v1527
    %v2165 = vpop.permute.xlu0 %2164
    %2168 = vset.pattern.permute.xlu0 0
    %2169 = vperm.xlu0 %2168, %v1530
    %v2170 = vpop.permute.xlu0 %2169
    %v2172 = vsub.f32 %v1535, %v1149
    %v2173 = vsub.f32 %v1540, %v1152
    %v2174 = vsub.f32 %v1545, %v1155
    %v2175 = vsub.f32 %v1550, %v1158
    %v2176 = vsub.f32 %v1555, %v1161
    %v2177 = vsub.f32 %v1560, %v1164
    %v2178 = vsub.f32 %v1565, %v1167
    %v2179 = vsub.f32 %v1570, %v1170
    %v2180 = vsub.f32 %v1575, %v1173
    %v2181 = vsub.f32 %v1580, %v1176
    %v2182 = vsub.f32 %v1585, %v1179
    %v2183 = vsub.f32 %v1590, %v1182
    %v2184 = vsub.f32 %v1595, %v1185
    %v2185 = vsub.f32 %v1600, %v1188
    %v2186 = vsub.f32 %v1605, %v1191
    %v2187 = vsub.f32 %v1610, %v1194
    %v2188 = vsub.f32 %v1615, %v1197
    %v2189 = vsub.f32 %v1620, %v1200
    %v2190 = vsub.f32 %v1625, %v1203
    %v2191 = vsub.f32 %v1630, %v1206
    %v2192 = vsub.f32 %v1635, %v1209
    %v2193 = vsub.f32 %v1640, %v1212
    %v2194 = vsub.f32 %v1645, %v1215
    %v2195 = vsub.f32 %v1650, %v1218
    %v2196 = vsub.f32 %v1655, %v1221
    %v2197 = vsub.f32 %v1660, %v1224
    %v2198 = vsub.f32 %v1665, %v1227
    %v2199 = vsub.f32 %v1670, %v1230
    %v2200 = vsub.f32 %v1675, %v1233
    %v2201 = vsub.f32 %v1680, %v1236
    %v2202 = vsub.f32 %v1685, %v1239
    %v2203 = vsub.f32 %v1690, %v1242
    %v2204 = vsub.f32 %v1695, %v1245
    %v2205 = vsub.f32 %v1700, %v1248
    %v2206 = vsub.f32 %v1705, %v1251
    %v2207 = vsub.f32 %v1710, %v1254
    %v2208 = vsub.f32 %v1715, %v1257
    %v2209 = vsub.f32 %v1720, %v1260
    %v2210 = vsub.f32 %v1725, %v1263
    %v2211 = vsub.f32 %v1730, %v1266
    %v2212 = vsub.f32 %v1735, %v1269
    %v2213 = vsub.f32 %v1740, %v1272
    %v2214 = vsub.f32 %v1745, %v1275
    %v2215 = vsub.f32 %v1750, %v1278
    %v2216 = vsub.f32 %v1755, %v1281
    %v2217 = vsub.f32 %v1760, %v1284
    %v2218 = vsub.f32 %v1765, %v1287
    %v2219 = vsub.f32 %v1770, %v1290
    %v2220 = vsub.f32 %v1775, %v1293
    %v2221 = vsub.f32 %v1780, %v1296
    %v2222 = vsub.f32 %v1785, %v1299
    %v2223 = vsub.f32 %v1790, %v1302
    %v2224 = vsub.f32 %v1795, %v1305
    %v2225 = vsub.f32 %v1800, %v1308
    %v2226 = vsub.f32 %v1805, %v1311
    %v2227 = vsub.f32 %v1810, %v1314
    %v2228 = vsub.f32 %v1815, %v1317
    %v2229 = vsub.f32 %v1820, %v1320
    %v2230 = vsub.f32 %v1825, %v1323
    %v2231 = vsub.f32 %v1830, %v1326
    %v2232 = vsub.f32 %v1835, %v1329
    %v2233 = vsub.f32 %v1840, %v1332
    %v2234 = vsub.f32 %v1845, %v1335
    %v2235 = vsub.f32 %v1850, %v1338
    %v2236 = vsub.f32 %v1855, %v1341
    %v2237 = vsub.f32 %v1860, %v1344
    %v2238 = vsub.f32 %v1865, %v1347
    %v2239 = vsub.f32 %v1870, %v1350
    %v2240 = vsub.f32 %v1875, %v1353
    %v2241 = vsub.f32 %v1880, %v1356
    %v2242 = vsub.f32 %v1885, %v1359
    %v2243 = vsub.f32 %v1890, %v1362
    %v2244 = vsub.f32 %v1895, %v1365
    %v2245 = vsub.f32 %v1900, %v1368
    %v2246 = vsub.f32 %v1905, %v1371
    %v2247 = vsub.f32 %v1910, %v1374
    %v2248 = vsub.f32 %v1915, %v1377
    %v2249 = vsub.f32 %v1920, %v1380
    %v2250 = vsub.f32 %v1925, %v1383
    %v2251 = vsub.f32 %v1930, %v1386
    %v2252 = vsub.f32 %v1935, %v1389
    %v2253 = vsub.f32 %v1940, %v1392
    %v2254 = vsub.f32 %v1945, %v1395
    %v2255 = vsub.f32 %v1950, %v1398
    %v2256 = vsub.f32 %v1955, %v1401
    %v2257 = vsub.f32 %v1960, %v1404
    %v2258 = vsub.f32 %v1965, %v1407
    %v2259 = vsub.f32 %v1970, %v1410
    %v2260 = vsub.f32 %v1975, %v1413
    %v2261 = vsub.f32 %v1980, %v1416
    %v2262 = vsub.f32 %v1985, %v1419
    %v2263 = vsub.f32 %v1990, %v1422
    %v2264 = vsub.f32 %v1995, %v1425
    %v2265 = vsub.f32 %v2000, %v1428
    %v2266 = vsub.f32 %v2005, %v1431
    %v2267 = vsub.f32 %v2010, %v1434
    %v2268 = vsub.f32 %v2015, %v1437
    %v2269 = vsub.f32 %v2020, %v1440
    %v2270 = vsub.f32 %v2025, %v1443
    %v2271 = vsub.f32 %v2030, %v1446
    %v2272 = vsub.f32 %v2035, %v1449
    %v2273 = vsub.f32 %v2040, %v1452
    %v2274 = vsub.f32 %v2045, %v1455
    %v2275 = vsub.f32 %v2050, %v1458
    %v2276 = vsub.f32 %v2055, %v1461
    %v2277 = vsub.f32 %v2060, %v1464
    %v2278 = vsub.f32 %v2065, %v1467
    %v2279 = vsub.f32 %v2070, %v1470
    %v2280 = vsub.f32 %v2075, %v1473
    %v2281 = vsub.f32 %v2080, %v1476
    %v2282 = vsub.f32 %v2085, %v1479
    %v2283 = vsub.f32 %v2090, %v1482
    %v2284 = vsub.f32 %v2095, %v1485
    %v2285 = vsub.f32 %v2100, %v1488
    %v2286 = vsub.f32 %v2105, %v1491
    %v2287 = vsub.f32 %v2110, %v1494
    %v2288 = vsub.f32 %v2115, %v1497
    %v2289 = vsub.f32 %v2120, %v1500
    %v2290 = vsub.f32 %v2125, %v1503
    %v2291 = vsub.f32 %v2130, %v1506
    %v2292 = vsub.f32 %v2135, %v1509
    %v2293 = vsub.f32 %v2140, %v1512
    %v2294 = vsub.f32 %v2145, %v1515
    %v2295 = vsub.f32 %v2150, %v1518
    %v2296 = vsub.f32 %v2155, %v1521
    %v2297 = vsub.f32 %v2160, %v1524
    %v2298 = vsub.f32 %v2165, %v1527
    %v2299 = vsub.f32 %v2170, %v1530
    %v2300 = vmul.f32 %v2172, 1.442695
    %v2301 = vpow.pop %v2300
    %v2302 = vmul.f32 %v2173, 1.442695
    %v2303 = vpow.pop %v2302
    %v2304 = vmul.f32 %v2174, 1.442695
    %v2305 = vpow.pop %v2304
    %v2306 = vmul.f32 %v2175, 1.442695
    %v2307 = vpow.pop %v2306
    %v2308 = vmul.f32 %v2176, 1.442695
    %v2309 = vpow.pop %v2308
    %v2310 = vmul.f32 %v2177, 1.442695
    %v2311 = vpow.pop %v2310
    %v2312 = vmul.f32 %v2178, 1.442695
    %v2313 = vpow.pop %v2312
    %v2314 = vmul.f32 %v2179, 1.442695
    %v2315 = vpow.pop %v2314
    %v2316 = vmul.f32 %v2180, 1.442695
    %v2317 = vpow.pop %v2316
    %v2318 = vmul.f32 %v2181, 1.442695
    %v2319 = vpow.pop %v2318
    %v2320 = vmul.f32 %v2182, 1.442695
    %v2321 = vpow.pop %v2320
    %v2322 = vmul.f32 %v2183, 1.442695
    %v2323 = vpow.pop %v2322
    %v2324 = vmul.f32 %v2184, 1.442695
    %v2325 = vpow.pop %v2324
    %v2326 = vmul.f32 %v2185, 1.442695
    %v2327 = vpow.pop %v2326
    %v2328 = vmul.f32 %v2186, 1.442695
    %v2329 = vpow.pop %v2328
    %v2330 = vmul.f32 %v2187, 1.442695
    %v2331 = vpow.pop %v2330
    %v2332 = vmul.f32 %v2188, 1.442695
    %v2333 = vpow.pop %v2332
    %v2334 = vmul.f32 %v2189, 1.442695
    %v2335 = vpow.pop %v2334
    %v2336 = vmul.f32 %v2190, 1.442695
    %v2337 = vpow.pop %v2336
    %v2338 = vmul.f32 %v2191, 1.442695
    %v2339 = vpow.pop %v2338
    %v2340 = vmul.f32 %v2192, 1.442695
    %v2341 = vpow.pop %v2340
    %v2342 = vmul.f32 %v2193, 1.442695
    %v2343 = vpow.pop %v2342
    %v2344 = vmul.f32 %v2194, 1.442695
    %v2345 = vpow.pop %v2344
    %v2346 = vmul.f32 %v2195, 1.442695
    %v2347 = vpow.pop %v2346
    %v2348 = vmul.f32 %v2196, 1.442695
    %v2349 = vpow.pop %v2348
    %v2350 = vmul.f32 %v2197, 1.442695
    %v2351 = vpow.pop %v2350
    %v2352 = vmul.f32 %v2198, 1.442695
    %v2353 = vpow.pop %v2352
    %v2354 = vmul.f32 %v2199, 1.442695
    %v2355 = vpow.pop %v2354
    %v2356 = vmul.f32 %v2200, 1.442695
    %v2357 = vpow.pop %v2356
    %v2358 = vmul.f32 %v2201, 1.442695
    %v2359 = vpow.pop %v2358
    %v2360 = vmul.f32 %v2202, 1.442695
    %v2361 = vpow.pop %v2360
    %v2362 = vmul.f32 %v2203, 1.442695
    %v2363 = vpow.pop %v2362
    %v2364 = vmul.f32 %v2204, 1.442695
    %v2365 = vpow.pop %v2364
    %v2366 = vmul.f32 %v2205, 1.442695
    %v2367 = vpow.pop %v2366
    %v2368 = vmul.f32 %v2206, 1.442695
    %v2369 = vpow.pop %v2368
    %v2370 = vmul.f32 %v2207, 1.442695
    %v2371 = vpow.pop %v2370
    %v2372 = vmul.f32 %v2208, 1.442695
    %v2373 = vpow.pop %v2372
    %v2374 = vmul.f32 %v2209, 1.442695
    %v2375 = vpow.pop %v2374
    %v2376 = vmul.f32 %v2210, 1.442695
    %v2377 = vpow.pop %v2376
    %v2378 = vmul.f32 %v2211, 1.442695
    %v2379 = vpow.pop %v2378
    %v2380 = vmul.f32 %v2212, 1.442695
    %v2381 = vpow.pop %v2380
    %v2382 = vmul.f32 %v2213, 1.442695
    %v2383 = vpow.pop %v2382
    %v2384 = vmul.f32 %v2214, 1.442695
    %v2385 = vpow.pop %v2384
    %v2386 = vmul.f32 %v2215, 1.442695
    %v2387 = vpow.pop %v2386
    %v2388 = vmul.f32 %v2216, 1.442695
    %v2389 = vpow.pop %v2388
    %v2390 = vmul.f32 %v2217, 1.442695
    %v2391 = vpow.pop %v2390
    %v2392 = vmul.f32 %v2218, 1.442695
    %v2393 = vpow.pop %v2392
    %v2394 = vmul.f32 %v2219, 1.442695
    %v2395 = vpow.pop %v2394
    %v2396 = vmul.f32 %v2220, 1.442695
    %v2397 = vpow.pop %v2396
    %v2398 = vmul.f32 %v2221, 1.442695
    %v2399 = vpow.pop %v2398
    %v2400 = vmul.f32 %v2222, 1.442695
    %v2401 = vpow.pop %v2400
    %v2402 = vmul.f32 %v2223, 1.442695
    %v2403 = vpow.pop %v2402
    %v2404 = vmul.f32 %v2224, 1.442695
    %v2405 = vpow.pop %v2404
    %v2406 = vmul.f32 %v2225, 1.442695
    %v2407 = vpow.pop %v2406
    %v2408 = vmul.f32 %v2226, 1.442695
    %v2409 = vpow.pop %v2408
    %v2410 = vmul.f32 %v2227, 1.442695
    %v2411 = vpow.pop %v2410
    %v2412 = vmul.f32 %v2228, 1.442695
    %v2413 = vpow.pop %v2412
    %v2414 = vmul.f32 %v2229, 1.442695
    %v2415 = vpow.pop %v2414
    %v2416 = vmul.f32 %v2230, 1.442695
    %v2417 = vpow.pop %v2416
    %v2418 = vmul.f32 %v2231, 1.442695
    %v2419 = vpow.pop %v2418
    %v2420 = vmul.f32 %v2232, 1.442695
    %v2421 = vpow.pop %v2420
    %v2422 = vmul.f32 %v2233, 1.442695
    %v2423 = vpow.pop %v2422
    %v2424 = vmul.f32 %v2234, 1.442695
    %v2425 = vpow.pop %v2424
    %v2426 = vmul.f32 %v2235, 1.442695
    %v2427 = vpow.pop %v2426
    %v2428 = vmul.f32 %v2236, 1.442695
    %v2429 = vpow.pop %v2428
    %v2430 = vmul.f32 %v2237, 1.442695
    %v2431 = vpow.pop %v2430
    %v2432 = vmul.f32 %v2238, 1.442695
    %v2433 = vpow.pop %v2432
    %v2434 = vmul.f32 %v2239, 1.442695
    %v2435 = vpow.pop %v2434
    %v2436 = vmul.f32 %v2240, 1.442695
    %v2437 = vpow.pop %v2436
    %v2438 = vmul.f32 %v2241, 1.442695
    %v2439 = vpow.pop %v2438
    %v2440 = vmul.f32 %v2242, 1.442695
    %v2441 = vpow.pop %v2440
    %v2442 = vmul.f32 %v2243, 1.442695
    %v2443 = vpow.pop %v2442
    %v2444 = vmul.f32 %v2244, 1.442695
    %v2445 = vpow.pop %v2444
    %v2446 = vmul.f32 %v2245, 1.442695
    %v2447 = vpow.pop %v2446
    %v2448 = vmul.f32 %v2246, 1.442695
    %v2449 = vpow.pop %v2448
    %v2450 = vmul.f32 %v2247, 1.442695
    %v2451 = vpow.pop %v2450
    %v2452 = vmul.f32 %v2248, 1.442695
    %v2453 = vpow.pop %v2452
    %v2454 = vmul.f32 %v2249, 1.442695
    %v2455 = vpow.pop %v2454
    %v2456 = vmul.f32 %v2250, 1.442695
    %v2457 = vpow.pop %v2456
    %v2458 = vmul.f32 %v2251, 1.442695
    %v2459 = vpow.pop %v2458
    %v2460 = vmul.f32 %v2252, 1.442695
    %v2461 = vpow.pop %v2460
    %v2462 = vmul.f32 %v2253, 1.442695
    %v2463 = vpow.pop %v2462
    %v2464 = vmul.f32 %v2254, 1.442695
    %v2465 = vpow.pop %v2464
    %v2466 = vmul.f32 %v2255, 1.442695
    %v2467 = vpow.pop %v2466
    %v2468 = vmul.f32 %v2256, 1.442695
    %v2469 = vpow.pop %v2468
    %v2470 = vmul.f32 %v2257, 1.442695
    %v2471 = vpow.pop %v2470
    %v2472 = vmul.f32 %v2258, 1.442695
    %v2473 = vpow.pop %v2472
    %v2474 = vmul.f32 %v2259, 1.442695
    %v2475 = vpow.pop %v2474
    %v2476 = vmul.f32 %v2260, 1.442695
    %v2477 = vpow.pop %v2476
    %v2478 = vmul.f32 %v2261, 1.442695
    %v2479 = vpow.pop %v2478
    %v2480 = vmul.f32 %v2262, 1.442695
    %v2481 = vpow.pop %v2480
    %v2482 = vmul.f32 %v2263, 1.442695
    %v2483 = vpow.pop %v2482
    %v2484 = vmul.f32 %v2264, 1.442695
    %v2485 = vpow.pop %v2484
    %v2486 = vmul.f32 %v2265, 1.442695
    %v2487 = vpow.pop %v2486
    %v2488 = vmul.f32 %v2266, 1.442695
    %v2489 = vpow.pop %v2488
    %v2490 = vmul.f32 %v2267, 1.442695
    %v2491 = vpow.pop %v2490
    %v2492 = vmul.f32 %v2268, 1.442695
    %v2493 = vpow.pop %v2492
    %v2494 = vmul.f32 %v2269, 1.442695
    %v2495 = vpow.pop %v2494
    %v2496 = vmul.f32 %v2270, 1.442695
    %v2497 = vpow.pop %v2496
    %v2498 = vmul.f32 %v2271, 1.442695
    %v2499 = vpow.pop %v2498
    %v2500 = vmul.f32 %v2272, 1.442695
    %v2501 = vpow.pop %v2500
    %v2502 = vmul.f32 %v2273, 1.442695
    %v2503 = vpow.pop %v2502
    %v2504 = vmul.f32 %v2274, 1.442695
    %v2505 = vpow.pop %v2504
    %v2506 = vmul.f32 %v2275, 1.442695
    %v2507 = vpow.pop %v2506
    %v2508 = vmul.f32 %v2276, 1.442695
    %v2509 = vpow.pop %v2508
    %v2510 = vmul.f32 %v2277, 1.442695
    %v2511 = vpow.pop %v2510
    %v2512 = vmul.f32 %v2278, 1.442695
    %v2513 = vpow.pop %v2512
    %v2514 = vmul.f32 %v2279, 1.442695
    %v2515 = vpow.pop %v2514
    %v2516 = vmul.f32 %v2280, 1.442695
    %v2517 = vpow.pop %v2516
    %v2518 = vmul.f32 %v2281, 1.442695
    %v2519 = vpow.pop %v2518
    %v2520 = vmul.f32 %v2282, 1.442695
    %v2521 = vpow.pop %v2520
    %v2522 = vmul.f32 %v2283, 1.442695
    %v2523 = vpow.pop %v2522
    %v2524 = vmul.f32 %v2284, 1.442695
    %v2525 = vpow.pop %v2524
    %v2526 = vmul.f32 %v2285, 1.442695
    %v2527 = vpow.pop %v2526
    %v2528 = vmul.f32 %v2286, 1.442695
    %v2529 = vpow.pop %v2528
    %v2530 = vmul.f32 %v2287, 1.442695
    %v2531 = vpow.pop %v2530
    %v2532 = vmul.f32 %v2288, 1.442695
    %v2533 = vpow.pop %v2532
    %v2534 = vmul.f32 %v2289, 1.442695
    %v2535 = vpow.pop %v2534
    %v2536 = vmul.f32 %v2290, 1.442695
    %v2537 = vpow.pop %v2536
    %v2538 = vmul.f32 %v2291, 1.442695
    %v2539 = vpow.pop %v2538
    %v2540 = vmul.f32 %v2292, 1.442695
    %v2541 = vpow.pop %v2540
    %v2542 = vmul.f32 %v2293, 1.442695
    %v2543 = vpow.pop %v2542
    %v2544 = vmul.f32 %v2294, 1.442695
    %v2545 = vpow.pop %v2544
    %v2546 = vmul.f32 %v2295, 1.442695
    %v2547 = vpow.pop %v2546
    %v2548 = vmul.f32 %v2296, 1.442695
    %v2549 = vpow.pop %v2548
    %v2550 = vmul.f32 %v2297, 1.442695
    %v2551 = vpow.pop %v2550
    %v2552 = vmul.f32 %v2298, 1.442695
    %v2553 = vpow.pop %v2552
    %v2554 = vmul.f32 %v2299, 1.442695
    %v2555 = vpow.pop %v2554
    %2556 = vadd.xlane.f32.xlu0 %v2301
    %v2557 = vpop.xlane.xlu0 %2556
    %2558 = vadd.xlane.f32.xlu0 %v2303
    %v2559 = vpop.xlane.xlu0 %2558
    %2560 = vadd.xlane.f32.xlu0 %v2305
    %v2561 = vpop.xlane.xlu0 %2560
    %2562 = vadd.xlane.f32.xlu0 %v2307
    %v2563 = vpop.xlane.xlu0 %2562
    %2564 = vadd.xlane.f32.xlu0 %v2309
    %v2565 = vpop.xlane.xlu0 %2564
    %2566 = vadd.xlane.f32.xlu0 %v2311
    %v2567 = vpop.xlane.xlu0 %2566
    %2568 = vadd.xlane.f32.xlu0 %v2313
    %v2569 = vpop.xlane.xlu0 %2568
    %2570 = vadd.xlane.f32.xlu0 %v2315
    %v2571 = vpop.xlane.xlu0 %2570
    %2572 = vadd.xlane.f32.xlu0 %v2317
    %v2573 = vpop.xlane.xlu0 %2572
    %2574 = vadd.xlane.f32.xlu0 %v2319
    %v2575 = vpop.xlane.xlu0 %2574
    %2576 = vadd.xlane.f32.xlu0 %v2321
    %v2577 = vpop.xlane.xlu0 %2576
    %2578 = vadd.xlane.f32.xlu0 %v2323
    %v2579 = vpop.xlane.xlu0 %2578
    %2580 = vadd.xlane.f32.xlu0 %v2325
    %v2581 = vpop.xlane.xlu0 %2580
    %2582 = vadd.xlane.f32.xlu0 %v2327
    %v2583 = vpop.xlane.xlu0 %2582
    %2584 = vadd.xlane.f32.xlu0 %v2329
    %v2585 = vpop.xlane.xlu0 %2584
    %2586 = vadd.xlane.f32.xlu0 %v2331
    %v2587 = vpop.xlane.xlu0 %2586
    %2588 = vadd.xlane.f32.xlu0 %v2333
    %v2589 = vpop.xlane.xlu0 %2588
    %2590 = vadd.xlane.f32.xlu0 %v2335
    %v2591 = vpop.xlane.xlu0 %2590
    %2592 = vadd.xlane.f32.xlu0 %v2337
    %v2593 = vpop.xlane.xlu0 %2592
    %2594 = vadd.xlane.f32.xlu0 %v2339
    %v2595 = vpop.xlane.xlu0 %2594
    %2596 = vadd.xlane.f32.xlu0 %v2341
    %v2597 = vpop.xlane.xlu0 %2596
    %2598 = vadd.xlane.f32.xlu0 %v2343
    %v2599 = vpop.xlane.xlu0 %2598
    %2600 = vadd.xlane.f32.xlu0 %v2345
    %v2601 = vpop.xlane.xlu0 %2600
    %2602 = vadd.xlane.f32.xlu0 %v2347
    %v2603 = vpop.xlane.xlu0 %2602
    %2604 = vadd.xlane.f32.xlu0 %v2349
    %v2605 = vpop.xlane.xlu0 %2604
    %2606 = vadd.xlane.f32.xlu0 %v2351
    %v2607 = vpop.xlane.xlu0 %2606
    %2608 = vadd.xlane.f32.xlu0 %v2353
    %v2609 = vpop.xlane.xlu0 %2608
    %2610 = vadd.xlane.f32.xlu0 %v2355
    %v2611 = vpop.xlane.xlu0 %2610
    %2612 = vadd.xlane.f32.xlu0 %v2357
    %v2613 = vpop.xlane.xlu0 %2612
    %2614 = vadd.xlane.f32.xlu0 %v2359
    %v2615 = vpop.xlane.xlu0 %2614
    %2616 = vadd.xlane.f32.xlu0 %v2361
    %v2617 = vpop.xlane.xlu0 %2616
    %2618 = vadd.xlane.f32.xlu0 %v2363
    %v2619 = vpop.xlane.xlu0 %2618
    %2620 = vadd.xlane.f32.xlu0 %v2365
    %v2621 = vpop.xlane.xlu0 %2620
    %2622 = vadd.xlane.f32.xlu0 %v2367
    %v2623 = vpop.xlane.xlu0 %2622
    %2624 = vadd.xlane.f32.xlu0 %v2369
    %v2625 = vpop.xlane.xlu0 %2624
    %2626 = vadd.xlane.f32.xlu0 %v2371
    %v2627 = vpop.xlane.xlu0 %2626
    %2628 = vadd.xlane.f32.xlu0 %v2373
    %v2629 = vpop.xlane.xlu0 %2628
    %2630 = vadd.xlane.f32.xlu0 %v2375
    %v2631 = vpop.xlane.xlu0 %2630
    %2632 = vadd.xlane.f32.xlu0 %v2377
    %v2633 = vpop.xlane.xlu0 %2632
    %2634 = vadd.xlane.f32.xlu0 %v2379
    %v2635 = vpop.xlane.xlu0 %2634
    %2636 = vadd.xlane.f32.xlu0 %v2381
    %v2637 = vpop.xlane.xlu0 %2636
    %2638 = vadd.xlane.f32.xlu0 %v2383
    %v2639 = vpop.xlane.xlu0 %2638
    %2640 = vadd.xlane.f32.xlu0 %v2385
    %v2641 = vpop.xlane.xlu0 %2640
    %2642 = vadd.xlane.f32.xlu0 %v2387
    %v2643 = vpop.xlane.xlu0 %2642
    %2644 = vadd.xlane.f32.xlu0 %v2389
    %v2645 = vpop.xlane.xlu0 %2644
    %2646 = vadd.xlane.f32.xlu0 %v2391
    %v2647 = vpop.xlane.xlu0 %2646
    %2648 = vadd.xlane.f32.xlu0 %v2393
    %v2649 = vpop.xlane.xlu0 %2648
    %2650 = vadd.xlane.f32.xlu0 %v2395
    %v2651 = vpop.xlane.xlu0 %2650
    %2652 = vadd.xlane.f32.xlu0 %v2397
    %v2653 = vpop.xlane.xlu0 %2652
    %2654 = vadd.xlane.f32.xlu0 %v2399
    %v2655 = vpop.xlane.xlu0 %2654
    %2656 = vadd.xlane.f32.xlu0 %v2401
    %v2657 = vpop.xlane.xlu0 %2656
    %2658 = vadd.xlane.f32.xlu0 %v2403
    %v2659 = vpop.xlane.xlu0 %2658
    %2660 = vadd.xlane.f32.xlu0 %v2405
    %v2661 = vpop.xlane.xlu0 %2660
    %2662 = vadd.xlane.f32.xlu0 %v2407
    %v2663 = vpop.xlane.xlu0 %2662
    %2664 = vadd.xlane.f32.xlu0 %v2409
    %v2665 = vpop.xlane.xlu0 %2664
    %2666 = vadd.xlane.f32.xlu0 %v2411
    %v2667 = vpop.xlane.xlu0 %2666
    %2668 = vadd.xlane.f32.xlu0 %v2413
    %v2669 = vpop.xlane.xlu0 %2668
    %2670 = vadd.xlane.f32.xlu0 %v2415
    %v2671 = vpop.xlane.xlu0 %2670
    %2672 = vadd.xlane.f32.xlu0 %v2417
    %v2673 = vpop.xlane.xlu0 %2672
    %2674 = vadd.xlane.f32.xlu0 %v2419
    %v2675 = vpop.xlane.xlu0 %2674
    %2676 = vadd.xlane.f32.xlu0 %v2421
    %v2677 = vpop.xlane.xlu0 %2676
    %2678 = vadd.xlane.f32.xlu0 %v2423
    %v2679 = vpop.xlane.xlu0 %2678
    %2680 = vadd.xlane.f32.xlu0 %v2425
    %v2681 = vpop.xlane.xlu0 %2680
    %2682 = vadd.xlane.f32.xlu0 %v2427
    %v2683 = vpop.xlane.xlu0 %2682
    %2684 = vadd.xlane.f32.xlu0 %v2429
    %v2685 = vpop.xlane.xlu0 %2684
    %2686 = vadd.xlane.f32.xlu0 %v2431
    %v2687 = vpop.xlane.xlu0 %2686
    %2688 = vadd.xlane.f32.xlu0 %v2433
    %v2689 = vpop.xlane.xlu0 %2688
    %2690 = vadd.xlane.f32.xlu0 %v2435
    %v2691 = vpop.xlane.xlu0 %2690
    %2692 = vadd.xlane.f32.xlu0 %v2437
    %v2693 = vpop.xlane.xlu0 %2692
    %2694 = vadd.xlane.f32.xlu0 %v2439
    %v2695 = vpop.xlane.xlu0 %2694
    %2696 = vadd.xlane.f32.xlu0 %v2441
    %v2697 = vpop.xlane.xlu0 %2696
    %2698 = vadd.xlane.f32.xlu0 %v2443
    %v2699 = vpop.xlane.xlu0 %2698
    %2700 = vadd.xlane.f32.xlu0 %v2445
    %v2701 = vpop.xlane.xlu0 %2700
    %2702 = vadd.xlane.f32.xlu0 %v2447
    %v2703 = vpop.xlane.xlu0 %2702
    %2704 = vadd.xlane.f32.xlu0 %v2449
    %v2705 = vpop.xlane.xlu0 %2704
    %2706 = vadd.xlane.f32.xlu0 %v2451
    %v2707 = vpop.xlane.xlu0 %2706
    %2708 = vadd.xlane.f32.xlu0 %v2453
    %v2709 = vpop.xlane.xlu0 %2708
    %2710 = vadd.xlane.f32.xlu0 %v2455
    %v2711 = vpop.xlane.xlu0 %2710
    %2712 = vadd.xlane.f32.xlu0 %v2457
    %v2713 = vpop.xlane.xlu0 %2712
    %2714 = vadd.xlane.f32.xlu0 %v2459
    %v2715 = vpop.xlane.xlu0 %2714
    %2716 = vadd.xlane.f32.xlu0 %v2461
    %v2717 = vpop.xlane.xlu0 %2716
    %2718 = vadd.xlane.f32.xlu0 %v2463
    %v2719 = vpop.xlane.xlu0 %2718
    %2720 = vadd.xlane.f32.xlu0 %v2465
    %v2721 = vpop.xlane.xlu0 %2720
    %2722 = vadd.xlane.f32.xlu0 %v2467
    %v2723 = vpop.xlane.xlu0 %2722
    %2724 = vadd.xlane.f32.xlu0 %v2469
    %v2725 = vpop.xlane.xlu0 %2724
    %2726 = vadd.xlane.f32.xlu0 %v2471
    %v2727 = vpop.xlane.xlu0 %2726
    %2728 = vadd.xlane.f32.xlu0 %v2473
    %v2729 = vpop.xlane.xlu0 %2728
    %2730 = vadd.xlane.f32.xlu0 %v2475
    %v2731 = vpop.xlane.xlu0 %2730
    %2732 = vadd.xlane.f32.xlu0 %v2477
    %v2733 = vpop.xlane.xlu0 %2732
    %2734 = vadd.xlane.f32.xlu0 %v2479
    %v2735 = vpop.xlane.xlu0 %2734
    %2736 = vadd.xlane.f32.xlu0 %v2481
    %v2737 = vpop.xlane.xlu0 %2736
    %2738 = vadd.xlane.f32.xlu0 %v2483
    %v2739 = vpop.xlane.xlu0 %2738
    %2740 = vadd.xlane.f32.xlu0 %v2485
    %v2741 = vpop.xlane.xlu0 %2740
    %2742 = vadd.xlane.f32.xlu0 %v2487
    %v2743 = vpop.xlane.xlu0 %2742
    %2744 = vadd.xlane.f32.xlu0 %v2489
    %v2745 = vpop.xlane.xlu0 %2744
    %2746 = vadd.xlane.f32.xlu0 %v2491
    %v2747 = vpop.xlane.xlu0 %2746
    %2748 = vadd.xlane.f32.xlu0 %v2493
    %v2749 = vpop.xlane.xlu0 %2748
    %2750 = vadd.xlane.f32.xlu0 %v2495
    %v2751 = vpop.xlane.xlu0 %2750
    %2752 = vadd.xlane.f32.xlu0 %v2497
    %v2753 = vpop.xlane.xlu0 %2752
    %2754 = vadd.xlane.f32.xlu0 %v2499
    %v2755 = vpop.xlane.xlu0 %2754
    %2756 = vadd.xlane.f32.xlu0 %v2501
    %v2757 = vpop.xlane.xlu0 %2756
    %2758 = vadd.xlane.f32.xlu0 %v2503
    %v2759 = vpop.xlane.xlu0 %2758
    %2760 = vadd.xlane.f32.xlu0 %v2505
    %v2761 = vpop.xlane.xlu0 %2760
    %2762 = vadd.xlane.f32.xlu0 %v2507
    %v2763 = vpop.xlane.xlu0 %2762
    %2764 = vadd.xlane.f32.xlu0 %v2509
    %v2765 = vpop.xlane.xlu0 %2764
    %2766 = vadd.xlane.f32.xlu0 %v2511
    %v2767 = vpop.xlane.xlu0 %2766
    %2768 = vadd.xlane.f32.xlu0 %v2513
    %v2769 = vpop.xlane.xlu0 %2768
    %2770 = vadd.xlane.f32.xlu0 %v2515
    %v2771 = vpop.xlane.xlu0 %2770
    %2772 = vadd.xlane.f32.xlu0 %v2517
    %v2773 = vpop.xlane.xlu0 %2772
    %2774 = vadd.xlane.f32.xlu0 %v2519
    %v2775 = vpop.xlane.xlu0 %2774
    %2776 = vadd.xlane.f32.xlu0 %v2521
    %v2777 = vpop.xlane.xlu0 %2776
    %2778 = vadd.xlane.f32.xlu0 %v2523
    %v2779 = vpop.xlane.xlu0 %2778
    %2780 = vadd.xlane.f32.xlu0 %v2525
    %v2781 = vpop.xlane.xlu0 %2780
    %2782 = vadd.xlane.f32.xlu0 %v2527
    %v2783 = vpop.xlane.xlu0 %2782
    %2784 = vadd.xlane.f32.xlu0 %v2529
    %v2785 = vpop.xlane.xlu0 %2784
    %2786 = vadd.xlane.f32.xlu0 %v2531
    %v2787 = vpop.xlane.xlu0 %2786
    %2788 = vadd.xlane.f32.xlu0 %v2533
    %v2789 = vpop.xlane.xlu0 %2788
    %2790 = vadd.xlane.f32.xlu0 %v2535
    %v2791 = vpop.xlane.xlu0 %2790
    %2792 = vadd.xlane.f32.xlu0 %v2537
    %v2793 = vpop.xlane.xlu0 %2792
    %2794 = vadd.xlane.f32.xlu0 %v2539
    %v2795 = vpop.xlane.xlu0 %2794
    %2796 = vadd.xlane.f32.xlu0 %v2541
    %v2797 = vpop.xlane.xlu0 %2796
    %2798 = vadd.xlane.f32.xlu0 %v2543
    %v2799 = vpop.xlane.xlu0 %2798
    %2800 = vadd.xlane.f32.xlu0 %v2545
    %v2801 = vpop.xlane.xlu0 %2800
    %2802 = vadd.xlane.f32.xlu0 %v2547
    %v2803 = vpop.xlane.xlu0 %2802
    %2804 = vadd.xlane.f32.xlu0 %v2549
    %v2805 = vpop.xlane.xlu0 %2804
    %2806 = vadd.xlane.f32.xlu0 %v2551
    %v2807 = vpop.xlane.xlu0 %2806
    %2808 = vadd.xlane.f32.xlu0 %v2553
    %v2809 = vpop.xlane.xlu0 %2808
    %2810 = vadd.xlane.f32.xlu0 %v2555
    %v2811 = vpop.xlane.xlu0 %2810
    %v2812 = vrcp.pop %v2557
    %v2813 = vrcp.pop %v2559
    %v2814 = vrcp.pop %v2561
    %v2815 = vrcp.pop %v2563
    %v2816 = vrcp.pop %v2565
    %v2817 = vrcp.pop %v2567
    %v2818 = vrcp.pop %v2569
    %v2819 = vrcp.pop %v2571
    %v2820 = vrcp.pop %v2573
    %v2821 = vrcp.pop %v2575
    %v2822 = vrcp.pop %v2577
    %v2823 = vrcp.pop %v2579
    %v2824 = vrcp.pop %v2581
    %v2825 = vrcp.pop %v2583
    %v2826 = vrcp.pop %v2585
    %v2827 = vrcp.pop %v2587
    %v2828 = vrcp.pop %v2589
    %v2829 = vrcp.pop %v2591
    %v2830 = vrcp.pop %v2593
    %v2831 = vrcp.pop %v2595
    %v2832 = vrcp.pop %v2597
    %v2833 = vrcp.pop %v2599
    %v2834 = vrcp.pop %v2601
    %v2835 = vrcp.pop %v2603
    %v2836 = vrcp.pop %v2605
    %v2837 = vrcp.pop %v2607
    %v2838 = vrcp.pop %v2609
    %v2839 = vrcp.pop %v2611
    %v2840 = vrcp.pop %v2613
    %v2841 = vrcp.pop %v2615
    %v2842 = vrcp.pop %v2617
    %v2843 = vrcp.pop %v2619
    %v2844 = vrcp.pop %v2621
    %v2845 = vrcp.pop %v2623
    %v2846 = vrcp.pop %v2625
    %v2847 = vrcp.pop %v2627
    %v2848 = vrcp.pop %v2629
    %v2849 = vrcp.pop %v2631
    %v2850 = vrcp.pop %v2633
    %v2851 = vrcp.pop %v2635
    %v2852 = vrcp.pop %v2637
    %v2853 = vrcp.pop %v2639
    %v2854 = vrcp.pop %v2641
    %v2855 = vrcp.pop %v2643
    %v2856 = vrcp.pop %v2645
    %v2857 = vrcp.pop %v2647
    %v2858 = vrcp.pop %v2649
    %v2859 = vrcp.pop %v2651
    %v2860 = vrcp.pop %v2653
    %v2861 = vrcp.pop %v2655
    %v2862 = vrcp.pop %v2657
    %v2863 = vrcp.pop %v2659
    %v2864 = vrcp.pop %v2661
    %v2865 = vrcp.pop %v2663
    %v2866 = vrcp.pop %v2665
    %v2867 = vrcp.pop %v2667
    %v2868 = vrcp.pop %v2669
    %v2869 = vrcp.pop %v2671
    %v2870 = vrcp.pop %v2673
    %v2871 = vrcp.pop %v2675
    %v2872 = vrcp.pop %v2677
    %v2873 = vrcp.pop %v2679
    %v2874 = vrcp.pop %v2681
    %v2875 = vrcp.pop %v2683
    %v2876 = vrcp.pop %v2685
    %v2877 = vrcp.pop %v2687
    %v2878 = vrcp.pop %v2689
    %v2879 = vrcp.pop %v2691
    %v2880 = vrcp.pop %v2693
    %v2881 = vrcp.pop %v2695
    %v2882 = vrcp.pop %v2697
    %v2883 = vrcp.pop %v2699
    %v2884 = vrcp.pop %v2701
    %v2885 = vrcp.pop %v2703
    %v2886 = vrcp.pop %v2705
    %v2887 = vrcp.pop %v2707
    %v2888 = vrcp.pop %v2709
    %v2889 = vrcp.pop %v2711
    %v2890 = vrcp.pop %v2713
    %v2891 = vrcp.pop %v2715
    %v2892 = vrcp.pop %v2717
    %v2893 = vrcp.pop %v2719
    %v2894 = vrcp.pop %v2721
    %v2895 = vrcp.pop %v2723
    %v2896 = vrcp.pop %v2725
    %v2897 = vrcp.pop %v2727
    %v2898 = vrcp.pop %v2729
    %v2899 = vrcp.pop %v2731
    %v2900 = vrcp.pop %v2733
    %v2901 = vrcp.pop %v2735
    %v2902 = vrcp.pop %v2737
    %v2903 = vrcp.pop %v2739
    %v2904 = vrcp.pop %v2741
    %v2905 = vrcp.pop %v2743
    %v2906 = vrcp.pop %v2745
    %v2907 = vrcp.pop %v2747
    %v2908 = vrcp.pop %v2749
    %v2909 = vrcp.pop %v2751
    %v2910 = vrcp.pop %v2753
    %v2911 = vrcp.pop %v2755
    %v2912 = vrcp.pop %v2757
    %v2913 = vrcp.pop %v2759
    %v2914 = vrcp.pop %v2761
    %v2915 = vrcp.pop %v2763
    %v2916 = vrcp.pop %v2765
    %v2917 = vrcp.pop %v2767
    %v2918 = vrcp.pop %v2769
    %v2919 = vrcp.pop %v2771
    %v2920 = vrcp.pop %v2773
    %v2921 = vrcp.pop %v2775
    %v2922 = vrcp.pop %v2777
    %v2923 = vrcp.pop %v2779
    %v2924 = vrcp.pop %v2781
    %v2925 = vrcp.pop %v2783
    %v2926 = vrcp.pop %v2785
    %v2927 = vrcp.pop %v2787
    %v2928 = vrcp.pop %v2789
    %v2929 = vrcp.pop %v2791
    %v2930 = vrcp.pop %v2793
    %v2931 = vrcp.pop %v2795
    %v2932 = vrcp.pop %v2797
    %v2933 = vrcp.pop %v2799
    %v2934 = vrcp.pop %v2801
    %v2935 = vrcp.pop %v2803
    %v2936 = vrcp.pop %v2805
    %v2937 = vrcp.pop %v2807
    %v2938 = vrcp.pop %v2809
    %v2939 = vrcp.pop %v2811
    %v2940 = vmul.f32 %v2301, %v2812
    %v2941 = vmul.f32 %v2303, %v2813
    %v2942 = vmul.f32 %v2305, %v2814
    %v2943 = vmul.f32 %v2307, %v2815
    %v2944 = vmul.f32 %v2309, %v2816
    %v2945 = vmul.f32 %v2311, %v2817
    %v2946 = vmul.f32 %v2313, %v2818
    %v2947 = vmul.f32 %v2315, %v2819
    %v2948 = vmul.f32 %v2317, %v2820
    %v2949 = vmul.f32 %v2319, %v2821
    %v2950 = vmul.f32 %v2321, %v2822
    %v2951 = vmul.f32 %v2323, %v2823
    %v2952 = vmul.f32 %v2325, %v2824
    %v2953 = vmul.f32 %v2327, %v2825
    %v2954 = vmul.f32 %v2329, %v2826
    %v2955 = vmul.f32 %v2331, %v2827
    %v2956 = vmul.f32 %v2333, %v2828
    %v2957 = vmul.f32 %v2335, %v2829
    %v2958 = vmul.f32 %v2337, %v2830
    %v2959 = vmul.f32 %v2339, %v2831
    %v2960 = vmul.f32 %v2341, %v2832
    %v2961 = vmul.f32 %v2343, %v2833
    %v2962 = vmul.f32 %v2345, %v2834
    %v2963 = vmul.f32 %v2347, %v2835
    %v2964 = vmul.f32 %v2349, %v2836
    %v2965 = vmul.f32 %v2351, %v2837
    %v2966 = vmul.f32 %v2353, %v2838
    %v2967 = vmul.f32 %v2355, %v2839
    %v2968 = vmul.f32 %v2357, %v2840
    %v2969 = vmul.f32 %v2359, %v2841
    %v2970 = vmul.f32 %v2361, %v2842
    %v2971 = vmul.f32 %v2363, %v2843
    %v2972 = vmul.f32 %v2365, %v2844
    %v2973 = vmul.f32 %v2367, %v2845
    %v2974 = vmul.f32 %v2369, %v2846
    %v2975 = vmul.f32 %v2371, %v2847
    %v2976 = vmul.f32 %v2373, %v2848
    %v2977 = vmul.f32 %v2375, %v2849
    %v2978 = vmul.f32 %v2377, %v2850
    %v2979 = vmul.f32 %v2379, %v2851
    %v2980 = vmul.f32 %v2381, %v2852
    %v2981 = vmul.f32 %v2383, %v2853
    %v2982 = vmul.f32 %v2385, %v2854
    %v2983 = vmul.f32 %v2387, %v2855
    %v2984 = vmul.f32 %v2389, %v2856
    %v2985 = vmul.f32 %v2391, %v2857
    %v2986 = vmul.f32 %v2393, %v2858
    %v2987 = vmul.f32 %v2395, %v2859
    %v2988 = vmul.f32 %v2397, %v2860
    %v2989 = vmul.f32 %v2399, %v2861
    %v2990 = vmul.f32 %v2401, %v2862
    %v2991 = vmul.f32 %v2403, %v2863
    %v2992 = vmul.f32 %v2405, %v2864
    %v2993 = vmul.f32 %v2407, %v2865
    %v2994 = vmul.f32 %v2409, %v2866
    %v2995 = vmul.f32 %v2411, %v2867
    %v2996 = vmul.f32 %v2413, %v2868
    %v2997 = vmul.f32 %v2415, %v2869
    %v2998 = vmul.f32 %v2417, %v2870
    %v2999 = vmul.f32 %v2419, %v2871
    %v3000 = vmul.f32 %v2421, %v2872
    %v3001 = vmul.f32 %v2423, %v2873
    %v3002 = vmul.f32 %v2425, %v2874
    %v3003 = vmul.f32 %v2427, %v2875
    %v3004 = vmul.f32 %v2429, %v2876
    %v3005 = vmul.f32 %v2431, %v2877
    %v3006 = vmul.f32 %v2433, %v2878
    %v3007 = vmul.f32 %v2435, %v2879
    %v3008 = vmul.f32 %v2437, %v2880
    %v3009 = vmul.f32 %v2439, %v2881
    %v3010 = vmul.f32 %v2441, %v2882
    %v3011 = vmul.f32 %v2443, %v2883
    %v3012 = vmul.f32 %v2445, %v2884
    %v3013 = vmul.f32 %v2447, %v2885
    %v3014 = vmul.f32 %v2449, %v2886
    %v3015 = vmul.f32 %v2451, %v2887
    %v3016 = vmul.f32 %v2453, %v2888
    %v3017 = vmul.f32 %v2455, %v2889
    %v3018 = vmul.f32 %v2457, %v2890
    %v3019 = vmul.f32 %v2459, %v2891
    %v3020 = vmul.f32 %v2461, %v2892
    %v3021 = vmul.f32 %v2463, %v2893
    %v3022 = vmul.f32 %v2465, %v2894
    %v3023 = vmul.f32 %v2467, %v2895
    %v3024 = vmul.f32 %v2469, %v2896
    %v3025 = vmul.f32 %v2471, %v2897
    %v3026 = vmul.f32 %v2473, %v2898
    %v3027 = vmul.f32 %v2475, %v2899
    %v3028 = vmul.f32 %v2477, %v2900
    %v3029 = vmul.f32 %v2479, %v2901
    %v3030 = vmul.f32 %v2481, %v2902
    %v3031 = vmul.f32 %v2483, %v2903
    %v3032 = vmul.f32 %v2485, %v2904
    %v3033 = vmul.f32 %v2487, %v2905
    %v3034 = vmul.f32 %v2489, %v2906
    %v3035 = vmul.f32 %v2491, %v2907
    %v3036 = vmul.f32 %v2493, %v2908
    %v3037 = vmul.f32 %v2495, %v2909
    %v3038 = vmul.f32 %v2497, %v2910
    %v3039 = vmul.f32 %v2499, %v2911
    %v3040 = vmul.f32 %v2501, %v2912
    %v3041 = vmul.f32 %v2503, %v2913
    %v3042 = vmul.f32 %v2505, %v2914
    %v3043 = vmul.f32 %v2507, %v2915
    %v3044 = vmul.f32 %v2509, %v2916
    %v3045 = vmul.f32 %v2511, %v2917
    %v3046 = vmul.f32 %v2513, %v2918
    %v3047 = vmul.f32 %v2515, %v2919
    %v3048 = vmul.f32 %v2517, %v2920
    %v3049 = vmul.f32 %v2519, %v2921
    %v3050 = vmul.f32 %v2521, %v2922
    %v3051 = vmul.f32 %v2523, %v2923
    %v3052 = vmul.f32 %v2525, %v2924
    %v3053 = vmul.f32 %v2527, %v2925
    %v3054 = vmul.f32 %v2529, %v2926
    %v3055 = vmul.f32 %v2531, %v2927
    %v3056 = vmul.f32 %v2533, %v2928
    %v3057 = vmul.f32 %v2535, %v2929
    %v3058 = vmul.f32 %v2537, %v2930
    %v3059 = vmul.f32 %v2539, %v2931
    %v3060 = vmul.f32 %v2541, %v2932
    %v3061 = vmul.f32 %v2543, %v2933
    %v3062 = vmul.f32 %v2545, %v2934
    %v3063 = vmul.f32 %v2547, %v2935
    %v3064 = vmul.f32 %v2549, %v2936
    %v3065 = vmul.f32 %v2551, %v2937
    %v3066 = vmul.f32 %v2553, %v2938
    %v3067 = vmul.f32 %v2555, %v2939
    %3068 = vst [vmem:[#allocation5] sm:$0xff] %v2940
    %3069 = vst [vmem:[#allocation5 + $0x8] sm:$0xff] %v2941
    %3070 = vst [vmem:[#allocation5 + $0x10] sm:$0xff] %v2942
    %3071 = vst [vmem:[#allocation5 + $0x18] sm:$0xff] %v2943
    %3072 = vst [vmem:[#allocation5 + $0x20] sm:$0xff] %v2944
    %3073 = vst [vmem:[#allocation5 + $0x28] sm:$0xff] %v2945
    %3074 = vst [vmem:[#allocation5 + $0x30] sm:$0xff] %v2946
    %3075 = vst [vmem:[#allocation5 + $0x38] sm:$0xff] %v2947
    %3076 = vst [vmem:[#allocation5 + $0x40] sm:$0xff] %v2948
    %3077 = vst [vmem:[#allocation5 + $0x48] sm:$0xff] %v2949
    %3078 = vst [vmem:[#allocation5 + $0x50] sm:$0xff] %v2950
    %3079 = vst [vmem:[#allocation5 + $0x58] sm:$0xff] %v2951
    %3080 = vst [vmem:[#allocation5 + $0x60] sm:$0xff] %v2952
    %3081 = vst [vmem:[#allocation5 + $0x68] sm:$0xff] %v2953
    %3082 = vst [vmem:[#allocation5 + $0x70] sm:$0xff] %v2954
    %3083 = vst [vmem:[#allocation5 + $0x78] sm:$0xff] %v2955
    %3084 = vst [vmem:[#allocation5 + $0x80] sm:$0xff] %v2956
    %3085 = vst [vmem:[#allocation5 + $0x88] sm:$0xff] %v2957
    %3086 = vst [vmem:[#allocation5 + $0x90] sm:$0xff] %v2958
    %3087 = vst [vmem:[#allocation5 + $0x98] sm:$0xff] %v2959
    %3088 = vst [vmem:[#allocation5 + $0xa0] sm:$0xff] %v2960
    %3089 = vst [vmem:[#allocation5 + $0xa8] sm:$0xff] %v2961
    %3090 = vst [vmem:[#allocation5 + $0xb0] sm:$0xff] %v2962
    %3091 = vst [vmem:[#allocation5 + $0xb8] sm:$0xff] %v2963
    %3092 = vst [vmem:[#allocation5 + $0xc0] sm:$0xff] %v2964
    %3093 = vst [vmem:[#allocation5 + $0xc8] sm:$0xff] %v2965
    %3094 = vst [vmem:[#allocation5 + $0xd0] sm:$0xff] %v2966
    %3095 = vst [vmem:[#allocation5 + $0xd8] sm:$0xff] %v2967
    %3096 = vst [vmem:[#allocation5 + $0xe0] sm:$0xff] %v2968
    %3097 = vst [vmem:[#allocation5 + $0xe8] sm:$0xff] %v2969
    %3098 = vst [vmem:[#allocation5 + $0xf0] sm:$0xff] %v2970
    %3099 = vst [vmem:[#allocation5 + $0xf8] sm:$0xff] %v2971
    %3100 = vst [vmem:[#allocation5 + $0x100] sm:$0xff] %v2972
    %3101 = vst [vmem:[#allocation5 + $0x108] sm:$0xff] %v2973
    %3102 = vst [vmem:[#allocation5 + $0x110] sm:$0xff] %v2974
    %3103 = vst [vmem:[#allocation5 + $0x118] sm:$0xff] %v2975
    %3104 = vst [vmem:[#allocation5 + $0x120] sm:$0xff] %v2976
    %3105 = vst [vmem:[#allocation5 + $0x128] sm:$0xff] %v2977
    %3106 = vst [vmem:[#allocation5 + $0x130] sm:$0xff] %v2978
    %3107 = vst [vmem:[#allocation5 + $0x138] sm:$0xff] %v2979
    %3108 = vst [vmem:[#allocation5 + $0x140] sm:$0xff] %v2980
    %3109 = vst [vmem:[#allocation5 + $0x148] sm:$0xff] %v2981
    %3110 = vst [vmem:[#allocation5 + $0x150] sm:$0xff] %v2982
    %3111 = vst [vmem:[#allocation5 + $0x158] sm:$0xff] %v2983
    %3112 = vst [vmem:[#allocation5 + $0x160] sm:$0xff] %v2984
    %3113 = vst [vmem:[#allocation5 + $0x168] sm:$0xff] %v2985
    %3114 = vst [vmem:[#allocation5 + $0x170] sm:$0xff] %v2986
    %3115 = vst [vmem:[#allocation5 + $0x178] sm:$0xff] %v2987
    %3116 = vst [vmem:[#allocation5 + $0x180] sm:$0xff] %v2988
    %3117 = vst [vmem:[#allocation5 + $0x188] sm:$0xff] %v2989
    %3118 = vst [vmem:[#allocation5 + $0x190] sm:$0xff] %v2990
    %3119 = vst [vmem:[#allocation5 + $0x198] sm:$0xff] %v2991
    %3120 = vst [vmem:[#allocation5 + $0x1a0] sm:$0xff] %v2992
    %3121 = vst [vmem:[#allocation5 + $0x1a8] sm:$0xff] %v2993
    %3122 = vst [vmem:[#allocation5 + $0x1b0] sm:$0xff] %v2994
    %3123 = vst [vmem:[#allocation5 + $0x1b8] sm:$0xff] %v2995
    %3124 = vst [vmem:[#allocation5 + $0x1c0] sm:$0xff] %v2996
    %3125 = vst [vmem:[#allocation5 + $0x1c8] sm:$0xff] %v2997
    %3126 = vst [vmem:[#allocation5 + $0x1d0] sm:$0xff] %v2998
    %3127 = vst [vmem:[#allocation5 + $0x1d8] sm:$0xff] %v2999
    %3128 = vst [vmem:[#allocation5 + $0x1e0] sm:$0xff] %v3000
    %3129 = vst [vmem:[#allocation5 + $0x1e8] sm:$0xff] %v3001
    %3130 = vst [vmem:[#allocation5 + $0x1f0] sm:$0xff] %v3002
    %3131 = vst [vmem:[#allocation5 + $0x1f8] sm:$0xff] %v3003
    %3132 = vst [vmem:[#allocation5 + $0x200] sm:$0xff] %v3004
    %3133 = vst [vmem:[#allocation5 + $0x208] sm:$0xff] %v3005
    %3134 = vst [vmem:[#allocation5 + $0x210] sm:$0xff] %v3006
    %3135 = vst [vmem:[#allocation5 + $0x218] sm:$0xff] %v3007
    %3136 = vst [vmem:[#allocation5 + $0x220] sm:$0xff] %v3008
    %3137 = vst [vmem:[#allocation5 + $0x228] sm:$0xff] %v3009
    %3138 = vst [vmem:[#allocation5 + $0x230] sm:$0xff] %v3010
    %3139 = vst [vmem:[#allocation5 + $0x238] sm:$0xff] %v3011
    %3140 = vst [vmem:[#allocation5 + $0x240] sm:$0xff] %v3012
    %3141 = vst [vmem:[#allocation5 + $0x248] sm:$0xff] %v3013
    %3142 = vst [vmem:[#allocation5 + $0x250] sm:$0xff] %v3014
    %3143 = vst [vmem:[#allocation5 + $0x258] sm:$0xff] %v3015
    %3144 = vst [vmem:[#allocation5 + $0x260] sm:$0xff] %v3016
    %3145 = vst [vmem:[#allocation5 + $0x268] sm:$0xff] %v3017
    %3146 = vst [vmem:[#allocation5 + $0x270] sm:$0xff] %v3018
    %3147 = vst [vmem:[#allocation5 + $0x278] sm:$0xff] %v3019
    %3148 = vst [vmem:[#allocation5 + $0x280] sm:$0xff] %v3020
    %3149 = vst [vmem:[#allocation5 + $0x288] sm:$0xff] %v3021
    %3150 = vst [vmem:[#allocation5 + $0x290] sm:$0xff] %v3022
    %3151 = vst [vmem:[#allocation5 + $0x298] sm:$0xff] %v3023
    %3152 = vst [vmem:[#allocation5 + $0x2a0] sm:$0xff] %v3024
    %3153 = vst [vmem:[#allocation5 + $0x2a8] sm:$0xff] %v3025
    %3154 = vst [vmem:[#allocation5 + $0x2b0] sm:$0xff] %v3026
    %3155 = vst [vmem:[#allocation5 + $0x2b8] sm:$0xff] %v3027
    %3156 = vst [vmem:[#allocation5 + $0x2c0] sm:$0xff] %v3028
    %3157 = vst [vmem:[#allocation5 + $0x2c8] sm:$0xff] %v3029
    %3158 = vst [vmem:[#allocation5 + $0x2d0] sm:$0xff] %v3030
    %3159 = vst [vmem:[#allocation5 + $0x2d8] sm:$0xff] %v3031
    %3160 = vst [vmem:[#allocation5 + $0x2e0] sm:$0xff] %v3032
    %3161 = vst [vmem:[#allocation5 + $0x2e8] sm:$0xff] %v3033
    %3162 = vst [vmem:[#allocation5 + $0x2f0] sm:$0xff] %v3034
    %3163 = vst [vmem:[#allocation5 + $0x2f8] sm:$0xff] %v3035
    %3164 = vst [vmem:[#allocation5 + $0x300] sm:$0xff] %v3036
    %3165 = vst [vmem:[#allocation5 + $0x308] sm:$0xff] %v3037
    %3166 = vst [vmem:[#allocation5 + $0x310] sm:$0xff] %v3038
    %3167 = vst [vmem:[#allocation5 + $0x318] sm:$0xff] %v3039
    %3168 = vst [vmem:[#allocation5 + $0x320] sm:$0xff] %v3040
    %3169 = vst [vmem:[#allocation5 + $0x328] sm:$0xff] %v3041
    %3170 = vst [vmem:[#allocation5 + $0x330] sm:$0xff] %v3042
    %3171 = vst [vmem:[#allocation5 + $0x338] sm:$0xff] %v3043
    %3172 = vst [vmem:[#allocation5 + $0x340] sm:$0xff] %v3044
    %3173 = vst [vmem:[#allocation5 + $0x348] sm:$0xff] %v3045
    %3174 = vst [vmem:[#allocation5 + $0x350] sm:$0xff] %v3046
    %3175 = vst [vmem:[#allocation5 + $0x358] sm:$0xff] %v3047
    %3176 = vst [vmem:[#allocation5 + $0x360] sm:$0xff] %v3048
    %3177 = vst [vmem:[#allocation5 + $0x368] sm:$0xff] %v3049
    %3178 = vst [vmem:[#allocation5 + $0x370] sm:$0xff] %v3050
    %3179 = vst [vmem:[#allocation5 + $0x378] sm:$0xff] %v3051
    %3180 = vst [vmem:[#allocation5 + $0x380] sm:$0xff] %v3052
    %3181 = vst [vmem:[#allocation5 + $0x388] sm:$0xff] %v3053
    %3182 = vst [vmem:[#allocation5 + $0x390] sm:$0xff] %v3054
    %3183 = vst [vmem:[#allocation5 + $0x398] sm:$0xff] %v3055
    %3184 = vst [vmem:[#allocation5 + $0x3a0] sm:$0xff] %v3056
    %3185 = vst [vmem:[#allocation5 + $0x3a8] sm:$0xff] %v3057
    %3186 = vst [vmem:[#allocation5 + $0x3b0] sm:$0xff] %v3058
    %3187 = vst [vmem:[#allocation5 + $0x3b8] sm:$0xff] %v3059
    %3188 = vst [vmem:[#allocation5 + $0x3c0] sm:$0xff] %v3060
    %3189 = vst [vmem:[#allocation5 + $0x3c8] sm:$0xff] %v3061
    %3190 = vst [vmem:[#allocation5 + $0x3d0] sm:$0xff] %v3062
    %3191 = vst [vmem:[#allocation5 + $0x3d8] sm:$0xff] %v3063
    %3192 = vst [vmem:[#allocation5 + $0x3e0] sm:$0xff] %v3064
    %3193 = vst [vmem:[#allocation5 + $0x3e8] sm:$0xff] %v3065
    %3194 = vst [vmem:[#allocation5 + $0x3f0] sm:$0xff] %v3066
    %3195 = vst [vmem:[#allocation5 + $0x3f8] sm:$0xff] %v3067
    // Predicated region
    $region10: #{tpu_custom_call.1} parent=1 // pred_check
      _
    $region11: #{tpu_custom_call.1} parent=1 // pred_check_branch
      %3197 = sbr.rel (0) target = $region13
    $region12: #{tpu_custom_call.1} parent=1 // pred_region
      %3199 = vsyncadd [#allocation4], 0
      %s3200 = sshll.u32 [#allocation5], 4
      %s3201 = int_to_ptr.vmem [resolvable:$true] %s3200
      %s3202 = sshll.u32 %s1, 4
      %s3203 = int_to_ptr.hbm [resolvable:$true] %s3202
      %3208 = dma.vmem_to_hbm [thread:$0]  %s3201, 16384, %s3203, [#allocation4], 128, 128, 8
    $region13: #{tpu_custom_call.1} parent=1 // pred_fallthru
      _
    // Predicated region
    $region14: #{tpu_custom_call.1} parent=1 // pred_check
      _
    $region15: #{tpu_custom_call.1} parent=1 // pred_check_branch
      %3210 = sbr.rel (0) target = $region17
    $region16: #{tpu_custom_call.1} parent=1 // pred_region
      %3212 = dma.done [#allocation4], 16384
    $region17: #{tpu_custom_call.1} parent=1 // pred_fallthru
      _
    %3213 = vsyncpa [#allocation3], 1
    %3214 = vsyncpa [#allocation4], 1

</llo_original>
